<compile_context>
chip_gen: v5e
topology: v5e:2x2
jax: 0.10.0
libtpu: 0.0.40
codegen_flags: <defaults>
</compile_context>

<pallas_src>
import functools

import numpy as np
import jax
import jax.numpy as jnp
from jax.experimental import pallas as pl
from jax.experimental.pallas import tpu as pltpu


# ----------------------------------------------------------------------------
# Host-side 1-D operator builders (match PyTorch semantics exactly)
# ----------------------------------------------------------------------------
def _adaptive_pool_matrix(in_size, out_size):
    """(out_size, in_size) matrix implementing 1-D AdaptiveAvgPool (PyTorch bins)."""
    P = np.zeros((out_size, in_size), dtype=np.float64)
    for i in range(out_size):
        start = (i * in_size) // out_size
        end = -((-(i + 1) * in_size) // out_size)  # ceil((i+1)*in/out)
        P[i, start:end] = 1.0 / (end - start)
    return P


def _bilinear_up_matrix(in_size, out_size):
    """(out_size, in_size) matrix implementing 1-D linear interp, align_corners=True."""
    U = np.zeros((out_size, in_size), dtype=np.float64)
    if in_size == 1:
        U[:, 0] = 1.0
        return U
    for o in range(out_size):
        pos = 0.0 if out_size == 1 else o * (in_size - 1) / (out_size - 1)
        i0 = min(int(np.floor(pos)), in_size - 2)
        frac = pos - i0
        U[o, i0] += 1.0 - frac
        U[o, i0 + 1] += frac
    return U


# ----------------------------------------------------------------------------
# Fused PSP kernel, per batch element (everything lane-dense on HW):
#   p_i = x @ R_i^T          (Cpad, s_i^2)   adaptive average pool
#   z_i = p_i @ Q_i^T        (Cpad, HW)      bilinear align_corners upsample
#   out = relu( Wall @ concat([z_1..z_n, x], axis=0) + bias )
# ----------------------------------------------------------------------------
def _psp_kernel(*refs, n_sizes):
    x_ref = refs[0]
    rt_refs = refs[1:1 + n_sizes]
    qt_refs = refs[1 + n_sizes:1 + 2 * n_sizes]
    wall_ref = refs[1 + 2 * n_sizes]
    b_ref = refs[2 + 2 * n_sizes]
    out_ref = refs[3 + 2 * n_sizes]

    x = x_ref[0].astype(jnp.float32)                                        # (Cpad, HW)

    pieces = []
    for i in range(n_sizes):                                                # small n, unrolled
        p = jnp.dot(x, rt_refs[i][...], preferred_element_type=jnp.float32)   # (Cpad, s^2)
        z = jnp.dot(p, qt_refs[i][...], preferred_element_type=jnp.float32)   # (Cpad, HW)
        pieces.append(z)
    pieces.append(x)                                                        # identity branch

    zcat = jnp.concatenate(pieces, axis=0)                                  # ((n+1)*Cpad, HW)
    acc = jnp.dot(wall_ref[...], zcat, preferred_element_type=jnp.float32)  # (Cout, HW)
    acc = acc + b_ref[...]                                                  # (Cout,1) lane bcast
    out_ref[0] = jnp.maximum(acc, 0.0).astype(out_ref.dtype)                # ReLU, unmasked vst


def psp_module(x_nchw, stage_weights, bottleneck_w, bottleneck_b, sizes=(2, 3, 6, 14)):
    """PSPModule forward. x: (N,C,H,W); stage_weights: list of (C,C,1,1) (bias-free);
    bottleneck_w: (Cout, (len(sizes)+1)*C, 1, 1); bottleneck_b: (Cout,)."""
    N, C, H, W = x_nchw.shape
    Cout = bottleneck_w.shape[0]
    HW = H * W
    n = len(sizes)
    Cpad = -(-C // 8) * 8                      # sublane-align every channel block

    # Factored spatial operators per pyramid level: pool (R) then upsample (Q).
    rt_list, qt_list = [], []
    for s in sizes:
        Ph = _adaptive_pool_matrix(H, s)       # (s, H)
        Pw = _adaptive_pool_matrix(W, s)       # (s, W)
        Uh = _bilinear_up_matrix(s, H)         # (H, s)
        Uw = _bilinear_up_matrix(s, W)         # (W, s)
        rt_list.append(jnp.asarray(np.kron(Ph, Pw).T, dtype=jnp.float32))   # (HW, s^2)
        qt_list.append(jnp.asarray(np.kron(Uh, Uw).T, dtype=jnp.float32))   # (s^2, HW)

    # Compose each stage's 1x1 conv with its bottleneck channel chunk; fuse all chunks
    # (incl. the identity chunk) into a single channel-mix matrix, zero-padded per block.
    wb2d = bottleneck_w[:, :, 0, 0].astype(jnp.float32)                # (Cout, (n+1)*C)
    blocks = []
    for i in range(n):
        Mi = wb2d[:, i * C:(i + 1) * C] @ stage_weights[i][:, :, 0, 0].astype(jnp.float32)
        blocks.append(jnp.pad(Mi, ((0, 0), (0, Cpad - C))))
    blocks.append(jnp.pad(wb2d[:, n * C:], ((0, 0), (0, Cpad - C))))   # identity chunk
    wall = jnp.concatenate(blocks, axis=1)                             # (Cout, (n+1)*Cpad)
    bias = bottleneck_b.reshape(Cout, 1).astype(jnp.float32)

    # NCHW-native flattening (free reshape, no transpose); pad channels to Cpad.
    x_flat = x_nchw.reshape(N, C, HW)
    x_pad = jnp.pad(x_flat, ((0, 0), (0, Cpad - C), (0, 0))).astype(jnp.float32)

    const2d = lambda b: (0, 0)
    kernel = functools.partial(_psp_kernel, n_sizes=n)
    out_flat = pl.pallas_call(
        kernel,
        out_shape=jax.ShapeDtypeStruct((N, Cout, HW), x_nchw.dtype),
        grid_spec=pltpu.PrefetchScalarGridSpec(
            num_scalar_prefetch=0,
            grid=(N,),
            in_specs=[
                pl.BlockSpec((1, Cpad, HW), lambda b: (b, 0, 0)),            # x (lane = HW)
                *[pl.BlockSpec((HW, s * s), const2d) for s in sizes],        # R_i^T (pool)
                *[pl.BlockSpec((s * s, HW), const2d) for s in sizes],        # Q_i^T (upsample)
                pl.BlockSpec((Cout, (n + 1) * Cpad), const2d),               # fused channel mix
                pl.BlockSpec((Cout, 1), const2d),                            # bottleneck bias
            ],
            out_specs=pl.BlockSpec((1, Cout, HW), lambda b: (b, 0, 0)),      # lane-dense out
        ),
        compiler_params=pltpu.CompilerParams(
            dimension_semantics=("parallel",),     # batch shards across TCs (v7x megacore)
            vmem_limit_bytes=32 * 1024 * 1024,     # explicit; far above this config's ~2 MiB
        ),
    )(x_pad, *rt_list, *qt_list, wall, bias)

    return out_flat.reshape(N, Cout, H, W)         # free reshape back to NCHW


# ----------------------------------------------------------------------------
# Pure-JAX reference implementing the PyTorch forward literally
# ----------------------------------------------------------------------------
def _adaptive_avg_pool_ref(x, out_size):
    def pool(v, out, axis):
        size = v.shape[axis]
        chunks = []
        for i in range(out):
            start = (i * size) // out
            end = -((-(i + 1) * size) // out)
            idx = [slice(None)] * v.ndim
            idx[axis] = slice(start, end)
            chunks.append(jnp.mean(v[tuple(idx)], axis=axis, keepdims=True))
        return jnp.concatenate(chunks, axis=axis)
    return pool(pool(x, out_size, 2), out_size, 3)


def _resize_bilinear_ac_ref(x, out_h, out_w):
    def interp(v, out_size, axis):
        in_size = v.shape[axis]
        if in_size == 1:
            return jnp.repeat(v, out_size, axis=axis)
        if out_size == 1:
            pos = jnp.zeros((1,), jnp.float32)
        else:
            pos = jnp.arange(out_size, dtype=jnp.float32) * ((in_size - 1) / (out_size - 1))
        i0 = jnp.clip(jnp.floor(pos).astype(jnp.int32), 0, in_size - 2)
        frac = pos - i0.astype(jnp.float32)
        v0 = jnp.take(v, i0, axis=axis)
        v1 = jnp.take(v, i0 + 1, axis=axis)
        shape = [1] * v.ndim
        shape[axis] = out_size
        frac = frac.reshape(shape)
        return v0 * (1.0 - frac) + v1 * frac
    return interp(interp(x, out_h, 2), out_w, 3)


def psp_module_ref(x, stage_weights, bottleneck_w, bottleneck_b, sizes=(2, 3, 6, 14)):
    N, C, H, W = x.shape
    priors = []
    for w_s, s in zip(stage_weights, sizes):
        p = _adaptive_avg_pool_ref(x, s)
        p = jnp.einsum('oi,nihw->nohw', w_s[:, :, 0, 0], p)
        p = _resize_bilinear_ac_ref(p, H, W)
        priors.append(p)
    priors.append(x)
    cat = jnp.concatenate(priors, axis=1)
    out = jnp.einsum('oi,nihw->nohw', bottleneck_w[:, :, 0, 0], cat)
    out = out + bottleneck_b.reshape(1, -1, 1, 1)
    return jnp.maximum(out, 0.0)


if __name__ == "__main__":
    N, C, H, W = 2, 4, 16, 16
    Cout = 128                       # out_features (small, lane-dense, for the test)
    sizes = (2, 3, 6, 14)

    key = jax.random.PRNGKey(0)
    keys = jax.random.split(key, 3 + len(sizes))
    x = jax.random.normal(keys[0], (N, C, H, W), dtype=jnp.float32)
    stage_ws = [0.1 * jax.random.normal(keys[1 + i], (C, C, 1, 1), dtype=jnp.float32)
                for i in range(len(sizes))]                         # bias=False stages
    wb = 0.1 * jax.random.normal(keys[-2], (Cout, C * (len(sizes) + 1), 1, 1),
                                 dtype=jnp.float32)                 # bottleneck weight
    bb = 0.1 * jax.random.normal(keys[-1], (Cout,), dtype=jnp.float32)  # bottleneck bias

    out = jax.block_until_ready(psp_module(x, stage_ws, wb, bb, sizes=sizes))
    ref = jax.block_until_ready(psp_module_ref(x, stage_ws, wb, bb, sizes=sizes))

    assert out.shape == (N, Cout, H, W)
    max_err = float(jnp.max(jnp.abs(out - ref)))
    assert jnp.allclose(out, ref, rtol=1e-3, atol=1e-3), max_err
    print("KERNEL_OK")
</pallas_src>

<mosaic_0001>
module attributes {stable_mosaic.version = 11 : i64} {
  func.func @_psp_kernel(%arg0: i32, %arg1: memref<1x8x256xf32, #tpu.memory_space<vmem>>, %arg2: memref<256x4xf32, #tpu.memory_space<vmem>>, %arg3: memref<256x9xf32, #tpu.memory_space<vmem>>, %arg4: memref<256x36xf32, #tpu.memory_space<vmem>>, %arg5: memref<256x196xf32, #tpu.memory_space<vmem>>, %arg6: memref<4x256xf32, #tpu.memory_space<vmem>>, %arg7: memref<9x256xf32, #tpu.memory_space<vmem>>, %arg8: memref<36x256xf32, #tpu.memory_space<vmem>>, %arg9: memref<196x256xf32, #tpu.memory_space<vmem>>, %arg10: memref<128x40xf32, #tpu.memory_space<vmem>>, %arg11: memref<128x1xf32, #tpu.memory_space<vmem>>, %arg12: memref<1x128x256xf32, #tpu.memory_space<vmem>>) attributes {dimension_semantics = [#tpu.dimension_semantics<parallel>], iteration_bounds = array<i64: 2>, scalar_prefetch = 0 : i64, scratch_operands = 0 : i64, tpu.core_type = #tpu.core_type<tc>, window_params = [{transform_indices = @transform_0, window_bounds = array<i64: 1, 8, 256>}, {pipeline_mode = #tpu.pipeline_mode<synchronous>, transform_indices = @transform_1, window_bounds = array<i64: 256, 4>}, {pipeline_mode = #tpu.pipeline_mode<synchronous>, transform_indices = @transform_2, window_bounds = array<i64: 256, 9>}, {pipeline_mode = #tpu.pipeline_mode<synchronous>, transform_indices = @transform_3, window_bounds = array<i64: 256, 36>}, {pipeline_mode = #tpu.pipeline_mode<synchronous>, transform_indices = @transform_4, window_bounds = array<i64: 256, 196>}, {pipeline_mode = #tpu.pipeline_mode<synchronous>, transform_indices = @transform_5, window_bounds = array<i64: 4, 256>}, {pipeline_mode = #tpu.pipeline_mode<synchronous>, transform_indices = @transform_6, window_bounds = array<i64: 9, 256>}, {pipeline_mode = #tpu.pipeline_mode<synchronous>, transform_indices = @transform_7, window_bounds = array<i64: 36, 256>}, {pipeline_mode = #tpu.pipeline_mode<synchronous>, transform_indices = @transform_8, window_bounds = array<i64: 196, 256>}, {pipeline_mode = #tpu.pipeline_mode<synchronous>, transform_indices = @transform_9, window_bounds = array<i64: 128, 40>}, {pipeline_mode = #tpu.pipeline_mode<synchronous>, transform_indices = @transform_10, window_bounds = array<i64: 128, 1>}, {transform_indices = @transform_11, window_bounds = array<i64: 1, 128, 256>}]} {
    %c0 = arith.constant 0 : index
    %c0_0 = arith.constant 0 : index
    %c0_1 = arith.constant 0 : index
    %0 = vector.load %arg1[%c0, %c0_0, %c0_1] : memref<1x8x256xf32, #tpu.memory_space<vmem>>, vector<1x8x256xf32>
    %1 = vector.shape_cast %0 : vector<1x8x256xf32> to vector<8x256xf32>
    %c0_2 = arith.constant 0 : index
    %c0_3 = arith.constant 0 : index
    %2 = vector.load %arg2[%c0_2, %c0_3] : memref<256x4xf32, #tpu.memory_space<vmem>>, vector<256x4xf32>
    %cst = arith.constant dense<0.000000e+00> : vector<8x4xf32>
    %3 = tpu.matmul %1, %2, %cst {dimension_numbers = #tpu.dot_dimension_numbers<[1], [0], [0], [1], [0, 0, 1, 1], [], []>} : vector<8x256xf32>, vector<256x4xf32>, vector<8x4xf32> -> vector<8x4xf32>
    %c0_4 = arith.constant 0 : index
    %c0_5 = arith.constant 0 : index
    %4 = vector.load %arg6[%c0_4, %c0_5] : memref<4x256xf32, #tpu.memory_space<vmem>>, vector<4x256xf32>
    %cst_6 = arith.constant dense<0.000000e+00> : vector<8x256xf32>
    %5 = tpu.matmul %3, %4, %cst_6 {dimension_numbers = #tpu.dot_dimension_numbers<[1], [0], [0], [1], [0, 0, 1, 1], [], []>} : vector<8x4xf32>, vector<4x256xf32>, vector<8x256xf32> -> vector<8x256xf32>
    %c0_7 = arith.constant 0 : index
    %c0_8 = arith.constant 0 : index
    %6 = vector.load %arg3[%c0_7, %c0_8] : memref<256x9xf32, #tpu.memory_space<vmem>>, vector<256x9xf32>
    %cst_9 = arith.constant dense<0.000000e+00> : vector<8x9xf32>
    %7 = tpu.matmul %1, %6, %cst_9 {dimension_numbers = #tpu.dot_dimension_numbers<[1], [0], [0], [1], [0, 0, 1, 1], [], []>} : vector<8x256xf32>, vector<256x9xf32>, vector<8x9xf32> -> vector<8x9xf32>
    %c0_10 = arith.constant 0 : index
    %c0_11 = arith.constant 0 : index
    %8 = vector.load %arg7[%c0_10, %c0_11] : memref<9x256xf32, #tpu.memory_space<vmem>>, vector<9x256xf32>
    %cst_12 = arith.constant dense<0.000000e+00> : vector<8x256xf32>
    %9 = tpu.matmul %7, %8, %cst_12 {dimension_numbers = #tpu.dot_dimension_numbers<[1], [0], [0], [1], [0, 0, 1, 1], [], []>} : vector<8x9xf32>, vector<9x256xf32>, vector<8x256xf32> -> vector<8x256xf32>
    %c0_13 = arith.constant 0 : index
    %c0_14 = arith.constant 0 : index
    %10 = vector.load %arg4[%c0_13, %c0_14] : memref<256x36xf32, #tpu.memory_space<vmem>>, vector<256x36xf32>
    %cst_15 = arith.constant dense<0.000000e+00> : vector<8x36xf32>
    %11 = tpu.matmul %1, %10, %cst_15 {dimension_numbers = #tpu.dot_dimension_numbers<[1], [0], [0], [1], [0, 0, 1, 1], [], []>} : vector<8x256xf32>, vector<256x36xf32>, vector<8x36xf32> -> vector<8x36xf32>
    %c0_16 = arith.constant 0 : index
    %c0_17 = arith.constant 0 : index
    %12 = vector.load %arg8[%c0_16, %c0_17] : memref<36x256xf32, #tpu.memory_space<vmem>>, vector<36x256xf32>
    %cst_18 = arith.constant dense<0.000000e+00> : vector<8x256xf32>
    %13 = tpu.matmul %11, %12, %cst_18 {dimension_numbers = #tpu.dot_dimension_numbers<[1], [0], [0], [1], [0, 0, 1, 1], [], []>} : vector<8x36xf32>, vector<36x256xf32>, vector<8x256xf32> -> vector<8x256xf32>
    %c0_19 = arith.constant 0 : index
    %c0_20 = arith.constant 0 : index
    %14 = vector.load %arg5[%c0_19, %c0_20] : memref<256x196xf32, #tpu.memory_space<vmem>>, vector<256x196xf32>
    %cst_21 = arith.constant dense<0.000000e+00> : vector<8x196xf32>
    %15 = tpu.matmul %1, %14, %cst_21 {dimension_numbers = #tpu.dot_dimension_numbers<[1], [0], [0], [1], [0, 0, 1, 1], [], []>} : vector<8x256xf32>, vector<256x196xf32>, vector<8x196xf32> -> vector<8x196xf32>
    %c0_22 = arith.constant 0 : index
    %c0_23 = arith.constant 0 : index
    %16 = vector.load %arg9[%c0_22, %c0_23] : memref<196x256xf32, #tpu.memory_space<vmem>>, vector<196x256xf32>
    %cst_24 = arith.constant dense<0.000000e+00> : vector<8x256xf32>
    %17 = tpu.matmul %15, %16, %cst_24 {dimension_numbers = #tpu.dot_dimension_numbers<[1], [0], [0], [1], [0, 0, 1, 1], [], []>} : vector<8x196xf32>, vector<196x256xf32>, vector<8x256xf32> -> vector<8x256xf32>
    %18 = tpu.concatenate %5, %9, %13, %17, %1 in 0 : vector<8x256xf32>, vector<8x256xf32>, vector<8x256xf32>, vector<8x256xf32>, vector<8x256xf32> -> vector<40x256xf32>
    %c0_25 = arith.constant 0 : index
    %c0_26 = arith.constant 0 : index
    %19 = vector.load %arg10[%c0_25, %c0_26] : memref<128x40xf32, #tpu.memory_space<vmem>>, vector<128x40xf32>
    %cst_27 = arith.constant dense<0.000000e+00> : vector<128x256xf32>
    %20 = tpu.matmul %19, %18, %cst_27 {dimension_numbers = #tpu.dot_dimension_numbers<[1], [0], [0], [1], [0, 0, 1, 1], [], []>} : vector<128x40xf32>, vector<40x256xf32>, vector<128x256xf32> -> vector<128x256xf32>
    %c0_28 = arith.constant 0 : index
    %c0_29 = arith.constant 0 : index
    %21 = vector.load %arg11[%c0_28, %c0_29] : memref<128x1xf32, #tpu.memory_space<vmem>>, vector<128x1xf32>
    %22 = vector.broadcast %21 : vector<128x1xf32> to vector<128x256xf32>
    %23 = arith.addf %20, %22 : vector<128x256xf32>
    %cst_30 = arith.constant 0.000000e+00 : f32
    %24 = vector.broadcast %cst_30 : f32 to vector<128x256xf32>
    %25 = arith.maximumf %23, %24 : vector<128x256xf32>
    %c0_31 = arith.constant 0 : index
    %c0_32 = arith.constant 0 : index
    %c0_33 = arith.constant 0 : index
    %26 = vector.load %arg12[%c0_31, %c0_32, %c0_33] : memref<1x128x256xf32, #tpu.memory_space<vmem>>, vector<1x128x256xf32>
    %27 = vector.shape_cast %26 : vector<1x128x256xf32> to vector<128x256xf32>
    %28 = vector.shape_cast %25 : vector<128x256xf32> to vector<1x128x256xf32>
    tpu.vector_store %arg12[%c0_31, %c0_32, %c0_33], %28 {strides = array<i32>} : memref<1x128x256xf32, #tpu.memory_space<vmem>>, vector<1x128x256xf32>,
    return
  }
  func.func @transform_0(%arg0: i32) -> (i32, i32, i32) {
    %c0_i32 = arith.constant 0 : i32
    %c0_i32_0 = arith.constant 0 : i32
    %c0_i32_1 = arith.constant 0 : i32
    return %arg0, %c0_i32, %c0_i32_0 : i32, i32, i32
  }
  func.func @transform_1(%arg0: i32) -> (i32, i32) {
    %c0_i32 = arith.constant 0 : i32
    %c0_i32_0 = arith.constant 0 : i32
    %c0_i32_1 = arith.constant 0 : i32
    return %c0_i32, %c0_i32_0 : i32, i32
  }
  func.func @transform_2(%arg0: i32) -> (i32, i32) {
    %c0_i32 = arith.constant 0 : i32
    %c0_i32_0 = arith.constant 0 : i32
    %c0_i32_1 = arith.constant 0 : i32
    return %c0_i32, %c0_i32_0 : i32, i32
  }
  func.func @transform_3(%arg0: i32) -> (i32, i32) {
    %c0_i32 = arith.constant 0 : i32
    %c0_i32_0 = arith.constant 0 : i32
    %c0_i32_1 = arith.constant 0 : i32
    return %c0_i32, %c0_i32_0 : i32, i32
  }
  func.func @transform_4(%arg0: i32) -> (i32, i32) {
    %c0_i32 = arith.constant 0 : i32
    %c0_i32_0 = arith.constant 0 : i32
    %c0_i32_1 = arith.constant 0 : i32
    return %c0_i32, %c0_i32_0 : i32, i32
  }
  func.func @transform_5(%arg0: i32) -> (i32, i32) {
    %c0_i32 = arith.constant 0 : i32
    %c0_i32_0 = arith.constant 0 : i32
    %c0_i32_1 = arith.constant 0 : i32
    return %c0_i32, %c0_i32_0 : i32, i32
  }
  func.func @transform_6(%arg0: i32) -> (i32, i32) {
    %c0_i32 = arith.constant 0 : i32
    %c0_i32_0 = arith.constant 0 : i32
    %c0_i32_1 = arith.constant 0 : i32
    return %c0_i32, %c0_i32_0 : i32, i32
  }
  func.func @transform_7(%arg0: i32) -> (i32, i32) {
    %c0_i32 = arith.constant 0 : i32
    %c0_i32_0 = arith.constant 0 : i32
    %c0_i32_1 = arith.constant 0 : i32
    return %c0_i32, %c0_i32_0 : i32, i32
  }
  func.func @transform_8(%arg0: i32) -> (i32, i32) {
    %c0_i32 = arith.constant 0 : i32
    %c0_i32_0 = arith.constant 0 : i32
    %c0_i32_1 = arith.constant 0 : i32
    return %c0_i32, %c0_i32_0 : i32, i32
  }
  func.func @transform_9(%arg0: i32) -> (i32, i32) {
    %c0_i32 = arith.constant 0 : i32
    %c0_i32_0 = arith.constant 0 : i32
    %c0_i32_1 = arith.constant 0 : i32
    return %c0_i32, %c0_i32_0 : i32, i32
  }
  func.func @transform_10(%arg0: i32) -> (i32, i32) {
    %c0_i32 = arith.constant 0 : i32
    %c0_i32_0 = arith.constant 0 : i32
    %c0_i32_1 = arith.constant 0 : i32
    return %c0_i32, %c0_i32_0 : i32, i32
  }
  func.func @transform_11(%arg0: i32) -> (i32, i32, i32) {
    %c0_i32 = arith.constant 0 : i32
    %c0_i32_0 = arith.constant 0 : i32
    %c0_i32_1 = arith.constant 0 : i32
    return %arg0, %c0_i32, %c0_i32_0 : i32, i32, i32
  }
}

</mosaic_0001>

<llo_original>
// kernel: tpu_custom_call.1
$region0: #{tpu_custom_call.1}
  #allocation0 [shape = 'u32[]', space=smem, size = 0x4, offset = 0x4, fixed_abs, tag = 'smem constant byte address 0x4 - core index']
  #allocation1 [shape = 'u32[72,128]{1,0:T(1,128)}', space=vmem, size = 0x9000, scoped, tag = 'internal scratch']
  %s0 = inlined_call_operand.vmem [shape: f32[2,8,256], index: 0, kind: input, shape index: {}]
  %s1 = inlined_call_operand.vmem [shape: f32[256,4], index: 1, kind: input, shape index: {}]
  %s2 = inlined_call_operand.vmem [shape: f32[256,9], index: 2, kind: input, shape index: {}]
  %s3 = inlined_call_operand.vmem [shape: f32[256,36], index: 3, kind: input, shape index: {}]
  %s4 = inlined_call_operand.vmem [shape: f32[256,196], index: 4, kind: input, shape index: {}]
  %s5 = inlined_call_operand.vmem [shape: f32[4,256], index: 5, kind: input, shape index: {}]
  %s6 = inlined_call_operand.vmem [shape: f32[9,256], index: 6, kind: input, shape index: {}]
  %s7 = inlined_call_operand.vmem [shape: f32[36,256], index: 7, kind: input, shape index: {}]
  %s8 = inlined_call_operand.vmem [shape: f32[196,256], index: 8, kind: input, shape index: {}]
  %s9 = inlined_call_operand.vmem [shape: f32[128,40], index: 9, kind: input, shape index: {}]
  %s10 = inlined_call_operand.vmem [shape: f32[128,1], index: 10, kind: input, shape index: {}]
  %s11 = inlined_call_operand.hbm [shape: f32[2,128,256], index: 11, kind: output, shape index: {}]
  %s12 = sld [smem:[#allocation0]]
  $region77: #{tpu_custom_call.1} parent=0
    _
  %s14 = ssub.s32 1, %s12
  %s15 = scalar_select 0, %s14, %s12
  $region1: #{tpu_custom_call.1} parent=0
    #allocation2 [shape = 'u8[262144]{0}', space=vmem, size = 0x40000, scoped, tag = 'output window, operand 0']
    #allocation3 [shape = 's32[2]{0}', space=sflag, size = 0x8, scoped, tag = 'scoped memory for tpu_custom_call.1']
    %16 = vsyncpa [#allocation3], 0
    %s17 = scalar_lea.sflag [#allocation3], 1
    %18 = vsyncpa %s17, 0
    loop: start=0, step=1, limit=4
    $region2: #{tpu_custom_call.1} parent=1 // loop_pre_header
      _
    $region3: #{tpu_custom_call.1} parent=1 // loop_header
      %s20 = sphi 0, %s24
      %p21 = scmp.ge.s32.totalorder %s20, 4
      %s30 = sphi 0, %s32
      %s33 = sphi 0, %s30
      %s34 = sphi 0, %s33
      %s50 = sphi 0, %s34
      %s54 = sphi 0, %s54
      %s56 = sphi 0, %s54
      %s57 = sphi 0, %s56
      %s71 = sphi 0, %s57
      %s75 = sphi 0, %s75
      %s77 = sphi 0, %s75
      %s78 = sphi 0, %s77
      %s92 = sphi 0, %s78
      %s96 = sphi 0, %s96
      %s98 = sphi 0, %s96
      %s99 = sphi 0, %s98
      %s113 = sphi 0, %s99
      %s117 = sphi 0, %s117
      %s119 = sphi 0, %s117
      %s120 = sphi 0, %s119
      %s134 = sphi 0, %s120
      %s138 = sphi 0, %s138
      %s140 = sphi 0, %s138
      %s141 = sphi 0, %s140
      %s155 = sphi 0, %s141
      %s159 = sphi 0, %s159
      %s161 = sphi 0, %s159
      %s162 = sphi 0, %s161
      %s176 = sphi 0, %s162
      %s180 = sphi 0, %s180
      %s182 = sphi 0, %s180
      %s183 = sphi 0, %s182
      %s197 = sphi 0, %s183
      %s201 = sphi 0, %s201
      %s203 = sphi 0, %s201
      %s204 = sphi 0, %s203
      %s218 = sphi 0, %s204
      %s222 = sphi 0, %s222
      %s224 = sphi 0, %s222
      %s225 = sphi 0, %s224
      %s239 = sphi 0, %s225
      %s243 = sphi 0, %s243
      %s245 = sphi 0, %s243
      %s246 = sphi 0, %s245
      %s260 = sphi 0, %s246
      %s266 = sphi 0, %s268
      %s269 = sphi 0, %s266
      %s270 = sphi 0, %s269
      %s286 = sphi 0, %s270
    $region4: #{tpu_custom_call.1} parent=1 // loop_header_branch
      %23 = sbr.rel (%p21) target = $region8
    $region5: #{tpu_custom_call.1} parent=1 // loop_body
      %s25 = ssub.s32 %s20, 1
      %s26 = ssub.s32 %s20, 2
      %s27 = sadd.s32 %s20, 1
      %s28 = ssub.s32 %s20, %s27
      %p29 = scmp.eq.s32.totalorder %s28, 0
      %s31 = sadd.s32 %s30, 1
      %s32 = scalar_select %p29, %s30, %s31
      %p35 = pneg %p29
      %p36 = scmp.eq.s32.totalorder %s20, 1
      %p37 = por %p35, %p36
      %p38 = scmp.ne.s32.totalorder %s30, %s33
      %p39 = scmp.eq.s32.totalorder %s20, 0
      %p40 = por %p38, %p39
      %p41 = scmp.ne.s32.totalorder %s30, %s33
      %p42 = scmp.eq.s32.totalorder %s25, 1
      %p43 = por %p41, %p42
      %p44 = scmp.ne.s32.totalorder %s33, %s34
      %p45 = scmp.eq.s32.totalorder %s25, 0
      %p46 = por %p44, %p45
      %p47 = scmp.ne.s32.totalorder %s33, %s34
      %p48 = scmp.eq.s32.totalorder %s26, 1
      %p49 = por %p47, %p48
      %p51 = scmp.ne.s32.totalorder %s34, %s50
      %p52 = scmp.eq.s32.totalorder %s26, 0
      %p53 = por %p51, %p52
      %s55 = sadd.s32 %s54, 1
      %p58 = scmp.eq.s32.totalorder %s20, 1
      %p59 = scmp.ne.s32.totalorder %s54, %s56
      %p60 = scmp.eq.s32.totalorder %s20, 0
      %p61 = por %p59, %p60
      %p62 = scmp.ne.s32.totalorder %s54, %s56
      %p63 = scmp.eq.s32.totalorder %s25, 1
      %p64 = por %p62, %p63
      %p65 = scmp.ne.s32.totalorder %s56, %s57
      %p66 = scmp.eq.s32.totalorder %s25, 0
      %p67 = por %p65, %p66
      %p68 = scmp.ne.s32.totalorder %s56, %s57
      %p69 = scmp.eq.s32.totalorder %s26, 1
      %p70 = por %p68, %p69
      %p72 = scmp.ne.s32.totalorder %s57, %s71
      %p73 = scmp.eq.s32.totalorder %s26, 0
      %p74 = por %p72, %p73
      %s76 = sadd.s32 %s75, 1
      %p79 = scmp.eq.s32.totalorder %s20, 1
      %p80 = scmp.ne.s32.totalorder %s75, %s77
      %p81 = scmp.eq.s32.totalorder %s20, 0
      %p82 = por %p80, %p81
      %p83 = scmp.ne.s32.totalorder %s75, %s77
      %p84 = scmp.eq.s32.totalorder %s25, 1
      %p85 = por %p83, %p84
      %p86 = scmp.ne.s32.totalorder %s77, %s78
      %p87 = scmp.eq.s32.totalorder %s25, 0
      %p88 = por %p86, %p87
      %p89 = scmp.ne.s32.totalorder %s77, %s78
      %p90 = scmp.eq.s32.totalorder %s26, 1
      %p91 = por %p89, %p90
      %p93 = scmp.ne.s32.totalorder %s78, %s92
      %p94 = scmp.eq.s32.totalorder %s26, 0
      %p95 = por %p93, %p94
      %s97 = sadd.s32 %s96, 1
      %p100 = scmp.eq.s32.totalorder %s20, 1
      %p101 = scmp.ne.s32.totalorder %s96, %s98
      %p102 = scmp.eq.s32.totalorder %s20, 0
      %p103 = por %p101, %p102
      %p104 = scmp.ne.s32.totalorder %s96, %s98
      %p105 = scmp.eq.s32.totalorder %s25, 1
      %p106 = por %p104, %p105
      %p107 = scmp.ne.s32.totalorder %s98, %s99
      %p108 = scmp.eq.s32.totalorder %s25, 0
      %p109 = por %p107, %p108
      %p110 = scmp.ne.s32.totalorder %s98, %s99
      %p111 = scmp.eq.s32.totalorder %s26, 1
      %p112 = por %p110, %p111
      %p114 = scmp.ne.s32.totalorder %s99, %s113
      %p115 = scmp.eq.s32.totalorder %s26, 0
      %p116 = por %p114, %p115
      %s118 = sadd.s32 %s117, 1
      %p121 = scmp.eq.s32.totalorder %s20, 1
      %p122 = scmp.ne.s32.totalorder %s117, %s119
      %p123 = scmp.eq.s32.totalorder %s20, 0
      %p124 = por %p122, %p123
      %p125 = scmp.ne.s32.totalorder %s117, %s119
      %p126 = scmp.eq.s32.totalorder %s25, 1
      %p127 = por %p125, %p126
      %p128 = scmp.ne.s32.totalorder %s119, %s120
      %p129 = scmp.eq.s32.totalorder %s25, 0
      %p130 = por %p128, %p129
      %p131 = scmp.ne.s32.totalorder %s119, %s120
      %p132 = scmp.eq.s32.totalorder %s26, 1
      %p133 = por %p131, %p132
      %p135 = scmp.ne.s32.totalorder %s120, %s134
      %p136 = scmp.eq.s32.totalorder %s26, 0
      %p137 = por %p135, %p136
      %s139 = sadd.s32 %s138, 1
      %p142 = scmp.eq.s32.totalorder %s20, 1
      %p143 = scmp.ne.s32.totalorder %s138, %s140
      %p144 = scmp.eq.s32.totalorder %s20, 0
      %p145 = por %p143, %p144
      %p146 = scmp.ne.s32.totalorder %s138, %s140
      %p147 = scmp.eq.s32.totalorder %s25, 1
      %p148 = por %p146, %p147
      %p149 = scmp.ne.s32.totalorder %s140, %s141
      %p150 = scmp.eq.s32.totalorder %s25, 0
      %p151 = por %p149, %p150
      %p152 = scmp.ne.s32.totalorder %s140, %s141
      %p153 = scmp.eq.s32.totalorder %s26, 1
      %p154 = por %p152, %p153
      %p156 = scmp.ne.s32.totalorder %s141, %s155
      %p157 = scmp.eq.s32.totalorder %s26, 0
      %p158 = por %p156, %p157
      %s160 = sadd.s32 %s159, 1
      %p163 = scmp.eq.s32.totalorder %s20, 1
      %p164 = scmp.ne.s32.totalorder %s159, %s161
      %p165 = scmp.eq.s32.totalorder %s20, 0
      %p166 = por %p164, %p165
      %p167 = scmp.ne.s32.totalorder %s159, %s161
      %p168 = scmp.eq.s32.totalorder %s25, 1
      %p169 = por %p167, %p168
      %p170 = scmp.ne.s32.totalorder %s161, %s162
      %p171 = scmp.eq.s32.totalorder %s25, 0
      %p172 = por %p170, %p171
      %p173 = scmp.ne.s32.totalorder %s161, %s162
      %p174 = scmp.eq.s32.totalorder %s26, 1
      %p175 = por %p173, %p174
      %p177 = scmp.ne.s32.totalorder %s162, %s176
      %p178 = scmp.eq.s32.totalorder %s26, 0
      %p179 = por %p177, %p178
      %s181 = sadd.s32 %s180, 1
      %p184 = scmp.eq.s32.totalorder %s20, 1
      %p185 = scmp.ne.s32.totalorder %s180, %s182
      %p186 = scmp.eq.s32.totalorder %s20, 0
      %p187 = por %p185, %p186
      %p188 = scmp.ne.s32.totalorder %s180, %s182
      %p189 = scmp.eq.s32.totalorder %s25, 1
      %p190 = por %p188, %p189
      %p191 = scmp.ne.s32.totalorder %s182, %s183
      %p192 = scmp.eq.s32.totalorder %s25, 0
      %p193 = por %p191, %p192
      %p194 = scmp.ne.s32.totalorder %s182, %s183
      %p195 = scmp.eq.s32.totalorder %s26, 1
      %p196 = por %p194, %p195
      %p198 = scmp.ne.s32.totalorder %s183, %s197
      %p199 = scmp.eq.s32.totalorder %s26, 0
      %p200 = por %p198, %p199
      %s202 = sadd.s32 %s201, 1
      %p205 = scmp.eq.s32.totalorder %s20, 1
      %p206 = scmp.ne.s32.totalorder %s201, %s203
      %p207 = scmp.eq.s32.totalorder %s20, 0
      %p208 = por %p206, %p207
      %p209 = scmp.ne.s32.totalorder %s201, %s203
      %p210 = scmp.eq.s32.totalorder %s25, 1
      %p211 = por %p209, %p210
      %p212 = scmp.ne.s32.totalorder %s203, %s204
      %p213 = scmp.eq.s32.totalorder %s25, 0
      %p214 = por %p212, %p213
      %p215 = scmp.ne.s32.totalorder %s203, %s204
      %p216 = scmp.eq.s32.totalorder %s26, 1
      %p217 = por %p215, %p216
      %p219 = scmp.ne.s32.totalorder %s204, %s218
      %p220 = scmp.eq.s32.totalorder %s26, 0
      %p221 = por %p219, %p220
      %s223 = sadd.s32 %s222, 1
      %p226 = scmp.eq.s32.totalorder %s20, 1
      %p227 = scmp.ne.s32.totalorder %s222, %s224
      %p228 = scmp.eq.s32.totalorder %s20, 0
      %p229 = por %p227, %p228
      %p230 = scmp.ne.s32.totalorder %s222, %s224
      %p231 = scmp.eq.s32.totalorder %s25, 1
      %p232 = por %p230, %p231
      %p233 = scmp.ne.s32.totalorder %s224, %s225
      %p234 = scmp.eq.s32.totalorder %s25, 0
      %p235 = por %p233, %p234
      %p236 = scmp.ne.s32.totalorder %s224, %s225
      %p237 = scmp.eq.s32.totalorder %s26, 1
      %p238 = por %p236, %p237
      %p240 = scmp.ne.s32.totalorder %s225, %s239
      %p241 = scmp.eq.s32.totalorder %s26, 0
      %p242 = por %p240, %p241
      %s244 = sadd.s32 %s243, 1
      %p247 = scmp.eq.s32.totalorder %s20, 1
      %p248 = scmp.ne.s32.totalorder %s243, %s245
      %p249 = scmp.eq.s32.totalorder %s20, 0
      %p250 = por %p248, %p249
      %p251 = scmp.ne.s32.totalorder %s243, %s245
      %p252 = scmp.eq.s32.totalorder %s25, 1
      %p253 = por %p251, %p252
      %p254 = scmp.ne.s32.totalorder %s245, %s246
      %p255 = scmp.eq.s32.totalorder %s25, 0
      %p256 = por %p254, %p255
      %p257 = scmp.ne.s32.totalorder %s245, %s246
      %p258 = scmp.eq.s32.totalorder %s26, 1
      %p259 = por %p257, %p258
      %p261 = scmp.ne.s32.totalorder %s246, %s260
      %p262 = scmp.eq.s32.totalorder %s26, 0
      %p263 = por %p261, %p262
      %s264 = ssub.s32 %s20, %s27
      %p265 = scmp.eq.s32.totalorder %s264, 0
      %s267 = sadd.s32 %s266, 1
      %s268 = scalar_select %p265, %s266, %s267
      %p271 = pneg %p265
      %p272 = scmp.eq.s32.totalorder %s20, 1
      %p273 = por %p271, %p272
      %p274 = scmp.ne.s32.totalorder %s266, %s269
      %p275 = scmp.eq.s32.totalorder %s20, 0
      %p276 = por %p274, %p275
      %p277 = scmp.ne.s32.totalorder %s266, %s269
      %p278 = scmp.eq.s32.totalorder %s25, 1
      %p279 = por %p277, %p278
      %p280 = scmp.ne.s32.totalorder %s269, %s270
      %p281 = scmp.eq.s32.totalorder %s25, 0
      %p282 = por %p280, %p281
      %p283 = scmp.ne.s32.totalorder %s269, %s270
      %p284 = scmp.eq.s32.totalorder %s26, 1
      %p285 = por %p283, %p284
      %p287 = scmp.ne.s32.totalorder %s270, %s286
      %p288 = scmp.eq.s32.totalorder %s26, 0
      %p289 = por %p287, %p288
      %p290 = scmp.le.s32.totalorder 1, %s20
      %p291 = scmp.lt.s32.totalorder %s20, 3
      %p292 = pnand %p290, %p291
      %p293 = pneg %p292
      // Predicated region
      $region9: #{tpu_custom_call.1} parent=5 // pred_check
        _
      $region10: #{tpu_custom_call.1} parent=5 // pred_check_branch
        %295 = sbr.rel (%p292) target = $region12
      $region11: #{tpu_custom_call.1} parent=5 // pred_region
        %s296 = ssub.s32 %s20, 1
        // Predicated region
        $region13: #{tpu_custom_call.1} parent=11 // pred_check
          %p297 = pneg %p67
        $region14: #{tpu_custom_call.1} parent=11 // pred_check_branch
          %299 = sbr.rel (%p297) target = $region16
        $region15: #{tpu_custom_call.1} parent=11 // pred_region
          _
        $region16: #{tpu_custom_call.1} parent=11 // pred_fallthru
          _
        // Predicated region
        $region17: #{tpu_custom_call.1} parent=11 // pred_check
          %p300 = pneg %p88
        $region18: #{tpu_custom_call.1} parent=11 // pred_check_branch
          %302 = sbr.rel (%p300) target = $region20
        $region19: #{tpu_custom_call.1} parent=11 // pred_region
          _
        $region20: #{tpu_custom_call.1} parent=11 // pred_fallthru
          _
        // Predicated region
        $region21: #{tpu_custom_call.1} parent=11 // pred_check
          %p303 = pneg %p109
        $region22: #{tpu_custom_call.1} parent=11 // pred_check_branch
          %305 = sbr.rel (%p303) target = $region24
        $region23: #{tpu_custom_call.1} parent=11 // pred_region
          _
        $region24: #{tpu_custom_call.1} parent=11 // pred_fallthru
          _
        // Predicated region
        $region25: #{tpu_custom_call.1} parent=11 // pred_check
          %p306 = pneg %p130
        $region26: #{tpu_custom_call.1} parent=11 // pred_check_branch
          %308 = sbr.rel (%p306) target = $region28
        $region27: #{tpu_custom_call.1} parent=11 // pred_region
          _
        $region28: #{tpu_custom_call.1} parent=11 // pred_fallthru
          _
        // Predicated region
        $region29: #{tpu_custom_call.1} parent=11 // pred_check
          %p309 = pneg %p151
        $region30: #{tpu_custom_call.1} parent=11 // pred_check_branch
          %311 = sbr.rel (%p309) target = $region32
        $region31: #{tpu_custom_call.1} parent=11 // pred_region
          _
        $region32: #{tpu_custom_call.1} parent=11 // pred_fallthru
          _
        // Predicated region
        $region33: #{tpu_custom_call.1} parent=11 // pred_check
          %p312 = pneg %p172
        $region34: #{tpu_custom_call.1} parent=11 // pred_check_branch
          %314 = sbr.rel (%p312) target = $region36
        $region35: #{tpu_custom_call.1} parent=11 // pred_region
          _
        $region36: #{tpu_custom_call.1} parent=11 // pred_fallthru
          _
        // Predicated region
        $region37: #{tpu_custom_call.1} parent=11 // pred_check
          %p315 = pneg %p193
        $region38: #{tpu_custom_call.1} parent=11 // pred_check_branch
          %317 = sbr.rel (%p315) target = $region40
        $region39: #{tpu_custom_call.1} parent=11 // pred_region
          _
        $region40: #{tpu_custom_call.1} parent=11 // pred_fallthru
          _
        // Predicated region
        $region41: #{tpu_custom_call.1} parent=11 // pred_check
          %p318 = pneg %p214
        $region42: #{tpu_custom_call.1} parent=11 // pred_check_branch
          %320 = sbr.rel (%p318) target = $region44
        $region43: #{tpu_custom_call.1} parent=11 // pred_region
          _
        $region44: #{tpu_custom_call.1} parent=11 // pred_fallthru
          _
        // Predicated region
        $region45: #{tpu_custom_call.1} parent=11 // pred_check
          %p321 = pneg %p235
        $region46: #{tpu_custom_call.1} parent=11 // pred_check_branch
          %323 = sbr.rel (%p321) target = $region48
        $region47: #{tpu_custom_call.1} parent=11 // pred_region
          _
        $region48: #{tpu_custom_call.1} parent=11 // pred_fallthru
          _
        // Predicated region
        $region49: #{tpu_custom_call.1} parent=11 // pred_check
          %p324 = pneg %p256
        $region50: #{tpu_custom_call.1} parent=11 // pred_check_branch
          %326 = sbr.rel (%p324) target = $region52
        $region51: #{tpu_custom_call.1} parent=11 // pred_region
          _
        $region52: #{tpu_custom_call.1} parent=11 // pred_fallthru
          _
      $region12: #{tpu_custom_call.1} parent=5 // pred_fallthru
        _
      %p327 = scmp.lt.s32.totalorder %s20, 2
      // Predicated region
      $region53: #{tpu_custom_call.1} parent=5 // pred_check
        %p328 = pneg %p327
      $region54: #{tpu_custom_call.1} parent=5 // pred_check_branch
        %330 = sbr.rel (%p328) target = $region56
      $region55: #{tpu_custom_call.1} parent=5 // pred_region
        // Predicated region
        $region57: #{tpu_custom_call.1} parent=55 // pred_check
          %p331 = pneg %p40
        $region58: #{tpu_custom_call.1} parent=55 // pred_check_branch
          %333 = sbr.rel (%p331) target = $region60
        $region59: #{tpu_custom_call.1} parent=55 // pred_region
          %p334 = scmp.lt.s32.totalorder %s20, 1
          %s335 = scalar_select %p334, %s20, 1
          %s336 = smul.addr %s335, 2
          %s337 = smul.addr %s336, 8
          %s338 = scalar_lea.vmem %s0, %s337
        $region60: #{tpu_custom_call.1} parent=55 // pred_fallthru
          _
      $region56: #{tpu_custom_call.1} parent=5 // pred_fallthru
        _
      %p339 = scmp.le.s32.totalorder 1, %s20
      %p340 = scmp.lt.s32.totalorder %s20, 3
      %p341 = pnand %p339, %p340
      %p342 = pneg %p341
      // Predicated region
      $region61: #{tpu_custom_call.1} parent=5 // pred_check
        _
      $region62: #{tpu_custom_call.1} parent=5 // pred_check_branch
        %344 = sbr.rel (%p341) target = $region64
      $region63: #{tpu_custom_call.1} parent=5 // pred_region
        %s345 = ssub.s32 %s20, 1
        %p346 = scmp.lt.s32.totalorder %s25, 1
        %s347 = scalar_select %p346, %s25, 1
        %s348 = smul.addr %s347, 2
        %s349 = smul.addr %s348, 8
        %s350 = scalar_lea.vmem %s0, %s349
        %p351 = pneg %p46
        %p352 = pneg %p43
        %p353 = pneg %p67
        %p354 = pneg %p64
        %p355 = pneg %p88
        %p356 = pneg %p85
        %p357 = pneg %p109
        %p358 = pneg %p106
        %p359 = pneg %p130
        %p360 = pneg %p127
        %p361 = pneg %p151
        %p362 = pneg %p148
        %p363 = pneg %p172
        %p364 = pneg %p169
        %p365 = pneg %p193
        %p366 = pneg %p190
        %p367 = pneg %p214
        %p368 = pneg %p211
        %p369 = pneg %p235
        %p370 = pneg %p232
        %p371 = pneg %p256
        %p372 = pneg %p253
        %p373 = pneg %p282
        %p374 = pneg %p279
        %s375 = sand.u32 %s269, 1
        %s376 = scalar_lea.sflag [#allocation3], %s375
        %s377 = sand.u32 %s269, 1
        %s378 = smul.addr %s377, 256
        %s379 = scalar_lea.vmem [#allocation2], %s378
        %p380 = scmp.lt.s32.totalorder %s25, 1
        %s381 = scalar_select %p380, %s25, 1
        %s382 = smul.addr %s381, 2
        %s383 = smul.addr %s382, 8
        %s384 = scalar_lea.vmem %s0, %s383
        %v385 = vld [vmem:[%s384] sm:$0xff]
        %v386 = vld [vmem:[%s384 + $0x8] sm:$0xff]
        %v387 = vld [vmem:[%s1] sm:$0xff]
        %v388 = vld [vmem:[%s1 + $0x8] sm:$0xff]
        %v389 = vld [vmem:[%s1 + $0x10] sm:$0xff]
        %v390 = vld [vmem:[%s1 + $0x18] sm:$0xff]
        %v391 = vld [vmem:[%s1 + $0x20] sm:$0xff]
        %v392 = vld [vmem:[%s1 + $0x28] sm:$0xff]
        %v393 = vld [vmem:[%s1 + $0x30] sm:$0xff]
        %v394 = vld [vmem:[%s1 + $0x38] sm:$0xff]
        %v395 = vld [vmem:[%s1 + $0x40] sm:$0xff]
        %v396 = vld [vmem:[%s1 + $0x48] sm:$0xff]
        %v397 = vld [vmem:[%s1 + $0x50] sm:$0xff]
        %v398 = vld [vmem:[%s1 + $0x58] sm:$0xff]
        %v399 = vld [vmem:[%s1 + $0x60] sm:$0xff]
        %v400 = vld [vmem:[%s1 + $0x68] sm:$0xff]
        %v401 = vld [vmem:[%s1 + $0x70] sm:$0xff]
        %v402 = vld [vmem:[%s1 + $0x78] sm:$0xff]
        %v403 = vld [vmem:[%s1 + $0x80] sm:$0xff]
        %v404 = vld [vmem:[%s1 + $0x88] sm:$0xff]
        %v405 = vld [vmem:[%s1 + $0x90] sm:$0xff]
        %v406 = vld [vmem:[%s1 + $0x98] sm:$0xff]
        %v407 = vld [vmem:[%s1 + $0xa0] sm:$0xff]
        %v408 = vld [vmem:[%s1 + $0xa8] sm:$0xff]
        %v409 = vld [vmem:[%s1 + $0xb0] sm:$0xff]
        %v410 = vld [vmem:[%s1 + $0xb8] sm:$0xff]
        %v411 = vld [vmem:[%s1 + $0xc0] sm:$0xff]
        %v412 = vld [vmem:[%s1 + $0xc8] sm:$0xff]
        %v413 = vld [vmem:[%s1 + $0xd0] sm:$0xff]
        %v414 = vld [vmem:[%s1 + $0xd8] sm:$0xff]
        %v415 = vld [vmem:[%s1 + $0xe0] sm:$0xff]
        %v416 = vld [vmem:[%s1 + $0xe8] sm:$0xff]
        %v417 = vld [vmem:[%s1 + $0xf0] sm:$0xff]
        %v418 = vld [vmem:[%s1 + $0xf8] sm:$0xff]
        %419 = vmatpush.msra.mxu0 %v402
        %420 = vmatpush.msra.mxu0 %v401
        %421 = vmatpush.msra.mxu0 %v400
        %422 = vmatpush.msra.mxu0 %v399
        %423 = vmatpush.msra.mxu0 %v398
        %424 = vmatpush.msra.mxu0 %v397
        %425 = vmatpush.msra.mxu0 %v396
        %426 = vmatpush.msra.mxu0 %v395
        %427 = vmatpush.msra.mxu0 %v394
        %428 = vmatpush.msra.mxu0 %v393
        %429 = vmatpush.msra.mxu0 %v392
        %430 = vmatpush.msra.mxu0 %v391
        %431 = vmatpush.msra.mxu0 %v390
        %432 = vmatpush.msra.mxu0 %v389
        %433 = vmatpush.msra.mxu0 %v388
        %434 = vmatpush.msra.mxu0 %v387
        %435 = vmatmul.f32.gmra.mxu0 %v385
        %v436 = vpop.f32.mrf.mxu0
        %v437 = vadd.f32 0.0, %v436
        %438 = vdwg.mxu0
        %439 = vmatpush.msra.mxu0 %v418
        %440 = vmatpush.msra.mxu0 %v417
        %441 = vmatpush.msra.mxu0 %v416
        %442 = vmatpush.msra.mxu0 %v415
        %443 = vmatpush.msra.mxu0 %v414
        %444 = vmatpush.msra.mxu0 %v413
        %445 = vmatpush.msra.mxu0 %v412
        %446 = vmatpush.msra.mxu0 %v411
        %447 = vmatpush.msra.mxu0 %v410
        %448 = vmatpush.msra.mxu0 %v409
        %449 = vmatpush.msra.mxu0 %v408
        %450 = vmatpush.msra.mxu0 %v407
        %451 = vmatpush.msra.mxu0 %v406
        %452 = vmatpush.msra.mxu0 %v405
        %453 = vmatpush.msra.mxu0 %v404
        %454 = vmatpush.msra.mxu0 %v403
        %455 = vmatmul.f32.gmra.mxu0 %v386
        %v456 = vpop.f32.mrf.mxu0
        %v457 = vadd.f32 %v437, %v456
        %458 = vdwg.mxu0
        %v459 = vld [vmem:[%s5] sm:$0xff]
        %461 = vst [vmem:[#allocation1] ss:$2 sm:$0xff] %v459
        %v462 = vld.sshfl [vmem:[#allocation1] sm:$0xff pattern:$0x75316420]
        %v463 = vld.sshfl [vmem:[#allocation1 + $0x8] sm:$0xff pattern:$0x75316420]
        %vm464 = vcmask 31744
        %v466 = vsel %vm464, %v457, 0
        %vm468 = vcmask 1043456
        %v469 = vsel %vm468, %v462, 0
        %v471 = vsel %vm468, %v463, 0
        %473 = vmatpush.msra.mxu0 0.0
        %474 = vmatpush.msra.mxu0 0.0
        %475 = vmatpush.msra.mxu0 0.0
        %476 = vmatpush.msra.mxu0 0.0
        %477 = vmatpush.msra.mxu0 0.0
        %478 = vmatpush.msra.mxu0 0.0
        %479 = vmatpush.msra.mxu0 0.0
        %480 = vmatpush.msra.mxu0 0.0
        %481 = vmatpush.msra.mxu0 0.0
        %482 = vmatpush.msra.mxu0 0.0
        %483 = vmatpush.msra.mxu0 0.0
        %484 = vmatpush.msra.mxu0 0.0
        %485 = vmatpush.msra.mxu0 0.0
        %486 = vmatpush.msra.mxu0 0.0
        %487 = vmatpush.msra.mxu0 0.0
        %488 = vmatpush.msra.mxu0 %v469
        %489 = vmatmul.f32.gmra.mxu0 %v466
        %v490 = vpop.f32.mrf.mxu0
        %v491 = vadd.f32 0.0, %v490
        %492 = vdwg.mxu0
        %493 = vmatpush.msra.mxu0 0.0
        %494 = vmatpush.msra.mxu0 0.0
        %495 = vmatpush.msra.mxu0 0.0
        %496 = vmatpush.msra.mxu0 0.0
        %497 = vmatpush.msra.mxu0 0.0
        %498 = vmatpush.msra.mxu0 0.0
        %499 = vmatpush.msra.mxu0 0.0
        %500 = vmatpush.msra.mxu0 0.0
        %501 = vmatpush.msra.mxu0 0.0
        %502 = vmatpush.msra.mxu0 0.0
        %503 = vmatpush.msra.mxu0 0.0
        %504 = vmatpush.msra.mxu0 0.0
        %505 = vmatpush.msra.mxu0 0.0
        %506 = vmatpush.msra.mxu0 0.0
        %507 = vmatpush.msra.mxu0 0.0
        %508 = vmatpush.msra.mxu0 %v471
        %509 = vmatmul.f32.gmra.mxu0 %v466
        %v510 = vpop.f32.mrf.mxu0
        %v511 = vadd.f32 0.0, %v510
        %512 = vdwg.mxu0
        %v513 = vld [vmem:[%s2] sm:$0xff]
        %v514 = vld [vmem:[%s2 + $0x8] sm:$0xff]
        %v515 = vld [vmem:[%s2 + $0x10] sm:$0xff]
        %v516 = vld [vmem:[%s2 + $0x18] sm:$0xff]
        %v517 = vld [vmem:[%s2 + $0x20] sm:$0xff]
        %v518 = vld [vmem:[%s2 + $0x28] sm:$0xff]
        %v519 = vld [vmem:[%s2 + $0x30] sm:$0xff]
        %v520 = vld [vmem:[%s2 + $0x38] sm:$0xff]
        %v521 = vld [vmem:[%s2 + $0x40] sm:$0xff]
        %v522 = vld [vmem:[%s2 + $0x48] sm:$0xff]
        %v523 = vld [vmem:[%s2 + $0x50] sm:$0xff]
        %v524 = vld [vmem:[%s2 + $0x58] sm:$0xff]
        %v525 = vld [vmem:[%s2 + $0x60] sm:$0xff]
        %v526 = vld [vmem:[%s2 + $0x68] sm:$0xff]
        %v527 = vld [vmem:[%s2 + $0x70] sm:$0xff]
        %v528 = vld [vmem:[%s2 + $0x78] sm:$0xff]
        %v529 = vld [vmem:[%s2 + $0x80] sm:$0xff]
        %v530 = vld [vmem:[%s2 + $0x88] sm:$0xff]
        %v531 = vld [vmem:[%s2 + $0x90] sm:$0xff]
        %v532 = vld [vmem:[%s2 + $0x98] sm:$0xff]
        %v533 = vld [vmem:[%s2 + $0xa0] sm:$0xff]
        %v534 = vld [vmem:[%s2 + $0xa8] sm:$0xff]
        %v535 = vld [vmem:[%s2 + $0xb0] sm:$0xff]
        %v536 = vld [vmem:[%s2 + $0xb8] sm:$0xff]
        %v537 = vld [vmem:[%s2 + $0xc0] sm:$0xff]
        %v538 = vld [vmem:[%s2 + $0xc8] sm:$0xff]
        %v539 = vld [vmem:[%s2 + $0xd0] sm:$0xff]
        %v540 = vld [vmem:[%s2 + $0xd8] sm:$0xff]
        %v541 = vld [vmem:[%s2 + $0xe0] sm:$0xff]
        %v542 = vld [vmem:[%s2 + $0xe8] sm:$0xff]
        %v543 = vld [vmem:[%s2 + $0xf0] sm:$0xff]
        %v544 = vld [vmem:[%s2 + $0xf8] sm:$0xff]
        %545 = vmatpush.msra.mxu0 %v528
        %546 = vmatpush.msra.mxu0 %v527
        %547 = vmatpush.msra.mxu0 %v526
        %548 = vmatpush.msra.mxu0 %v525
        %549 = vmatpush.msra.mxu0 %v524
        %550 = vmatpush.msra.mxu0 %v523
        %551 = vmatpush.msra.mxu0 %v522
        %552 = vmatpush.msra.mxu0 %v521
        %553 = vmatpush.msra.mxu0 %v520
        %554 = vmatpush.msra.mxu0 %v519
        %555 = vmatpush.msra.mxu0 %v518
        %556 = vmatpush.msra.mxu0 %v517
        %557 = vmatpush.msra.mxu0 %v516
        %558 = vmatpush.msra.mxu0 %v515
        %559 = vmatpush.msra.mxu0 %v514
        %560 = vmatpush.msra.mxu0 %v513
        %561 = vmatmul.f32.gmra.mxu0 %v385
        %v562 = vpop.f32.mrf.mxu0
        %v563 = vadd.f32 0.0, %v562
        %564 = vdwg.mxu0
        %565 = vmatpush.msra.mxu0 %v544
        %566 = vmatpush.msra.mxu0 %v543
        %567 = vmatpush.msra.mxu0 %v542
        %568 = vmatpush.msra.mxu0 %v541
        %569 = vmatpush.msra.mxu0 %v540
        %570 = vmatpush.msra.mxu0 %v539
        %571 = vmatpush.msra.mxu0 %v538
        %572 = vmatpush.msra.mxu0 %v537
        %573 = vmatpush.msra.mxu0 %v536
        %574 = vmatpush.msra.mxu0 %v535
        %575 = vmatpush.msra.mxu0 %v534
        %576 = vmatpush.msra.mxu0 %v533
        %577 = vmatpush.msra.mxu0 %v532
        %578 = vmatpush.msra.mxu0 %v531
        %579 = vmatpush.msra.mxu0 %v530
        %580 = vmatpush.msra.mxu0 %v529
        %581 = vmatmul.f32.gmra.mxu0 %v386
        %v582 = vpop.f32.mrf.mxu0
        %v583 = vadd.f32 %v563, %v582
        %584 = vdwg.mxu0
        %v585 = vld [vmem:[%s6] sm:$0xff]
        %v586 = vld [vmem:[%s6 + $0x8] sm:$0xff]
        %v587 = vld [vmem:[%s6 + $0x10] sm:$0x1]
        %v588 = vld [vmem:[%s6 + $0x18] sm:$0x1]
        %vm589 = vcmask 72704
        %v591 = vsel %vm589, %v583, 0
        %vm593 = vcmask 1040384
        %v595 = vsel %vm593, %v587, 0
        %v598 = vsel %vm593, %v588, 0
        %600 = vmatpush.msra.mxu0 0.0
        %601 = vmatpush.msra.mxu0 0.0
        %602 = vmatpush.msra.mxu0 0.0
        %603 = vmatpush.msra.mxu0 0.0
        %604 = vmatpush.msra.mxu0 0.0
        %605 = vmatpush.msra.mxu0 0.0
        %606 = vmatpush.msra.mxu0 0.0
        %607 = vmatpush.msra.mxu0 0.0
        %608 = vmatpush.msra.mxu0 0.0
        %609 = vmatpush.msra.mxu0 0.0
        %610 = vmatpush.msra.mxu0 0.0
        %611 = vmatpush.msra.mxu0 0.0
        %612 = vmatpush.msra.mxu0 0.0
        %613 = vmatpush.msra.mxu0 0.0
        %614 = vmatpush.msra.mxu0 %v595
        %615 = vmatpush.msra.mxu0 %v585
        %616 = vmatmul.f32.gmra.mxu0 %v591
        %v617 = vpop.f32.mrf.mxu0
        %v618 = vadd.f32 0.0, %v617
        %619 = vdwg.mxu0
        %620 = vmatpush.msra.mxu0 0.0
        %621 = vmatpush.msra.mxu0 0.0
        %622 = vmatpush.msra.mxu0 0.0
        %623 = vmatpush.msra.mxu0 0.0
        %624 = vmatpush.msra.mxu0 0.0
        %625 = vmatpush.msra.mxu0 0.0
        %626 = vmatpush.msra.mxu0 0.0
        %627 = vmatpush.msra.mxu0 0.0
        %628 = vmatpush.msra.mxu0 0.0
        %629 = vmatpush.msra.mxu0 0.0
        %630 = vmatpush.msra.mxu0 0.0
        %631 = vmatpush.msra.mxu0 0.0
        %632 = vmatpush.msra.mxu0 0.0
        %633 = vmatpush.msra.mxu0 0.0
        %634 = vmatpush.msra.mxu0 %v598
        %635 = vmatpush.msra.mxu0 %v586
        %636 = vmatmul.f32.gmra.mxu0 %v591
        %v637 = vpop.f32.mrf.mxu0
        %v638 = vadd.f32 0.0, %v637
        %639 = vdwg.mxu0
        %v640 = vld [vmem:[%s3] sm:$0xff]
        %v641 = vld [vmem:[%s3 + $0x8] sm:$0xff]
        %v642 = vld [vmem:[%s3 + $0x10] sm:$0xff]
        %v643 = vld [vmem:[%s3 + $0x18] sm:$0xff]
        %v644 = vld [vmem:[%s3 + $0x20] sm:$0xff]
        %v645 = vld [vmem:[%s3 + $0x28] sm:$0xff]
        %v646 = vld [vmem:[%s3 + $0x30] sm:$0xff]
        %v647 = vld [vmem:[%s3 + $0x38] sm:$0xff]
        %v648 = vld [vmem:[%s3 + $0x40] sm:$0xff]
        %v649 = vld [vmem:[%s3 + $0x48] sm:$0xff]
        %v650 = vld [vmem:[%s3 + $0x50] sm:$0xff]
        %v651 = vld [vmem:[%s3 + $0x58] sm:$0xff]
        %v652 = vld [vmem:[%s3 + $0x60] sm:$0xff]
        %v653 = vld [vmem:[%s3 + $0x68] sm:$0xff]
        %v654 = vld [vmem:[%s3 + $0x70] sm:$0xff]
        %v655 = vld [vmem:[%s3 + $0x78] sm:$0xff]
        %v656 = vld [vmem:[%s3 + $0x80] sm:$0xff]
        %v657 = vld [vmem:[%s3 + $0x88] sm:$0xff]
        %v658 = vld [vmem:[%s3 + $0x90] sm:$0xff]
        %v659 = vld [vmem:[%s3 + $0x98] sm:$0xff]
        %v660 = vld [vmem:[%s3 + $0xa0] sm:$0xff]
        %v661 = vld [vmem:[%s3 + $0xa8] sm:$0xff]
        %v662 = vld [vmem:[%s3 + $0xb0] sm:$0xff]
        %v663 = vld [vmem:[%s3 + $0xb8] sm:$0xff]
        %v664 = vld [vmem:[%s3 + $0xc0] sm:$0xff]
        %v665 = vld [vmem:[%s3 + $0xc8] sm:$0xff]
        %v666 = vld [vmem:[%s3 + $0xd0] sm:$0xff]
        %v667 = vld [vmem:[%s3 + $0xd8] sm:$0xff]
        %v668 = vld [vmem:[%s3 + $0xe0] sm:$0xff]
        %v669 = vld [vmem:[%s3 + $0xe8] sm:$0xff]
        %v670 = vld [vmem:[%s3 + $0xf0] sm:$0xff]
        %v671 = vld [vmem:[%s3 + $0xf8] sm:$0xff]
        %672 = vmatpush.msra.mxu0 %v655
        %673 = vmatpush.msra.mxu0 %v654
        %674 = vmatpush.msra.mxu0 %v653
        %675 = vmatpush.msra.mxu0 %v652
        %676 = vmatpush.msra.mxu0 %v651
        %677 = vmatpush.msra.mxu0 %v650
        %678 = vmatpush.msra.mxu0 %v649
        %679 = vmatpush.msra.mxu0 %v648
        %680 = vmatpush.msra.mxu0 %v647
        %681 = vmatpush.msra.mxu0 %v646
        %682 = vmatpush.msra.mxu0 %v645
        %683 = vmatpush.msra.mxu0 %v644
        %684 = vmatpush.msra.mxu0 %v643
        %685 = vmatpush.msra.mxu0 %v642
        %686 = vmatpush.msra.mxu0 %v641
        %687 = vmatpush.msra.mxu0 %v640
        %688 = vmatmul.f32.gmra.mxu0 %v385
        %v689 = vpop.f32.mrf.mxu0
        %v690 = vadd.f32 0.0, %v689
        %691 = vdwg.mxu0
        %692 = vmatpush.msra.mxu0 %v671
        %693 = vmatpush.msra.mxu0 %v670
        %694 = vmatpush.msra.mxu0 %v669
        %695 = vmatpush.msra.mxu0 %v668
        %696 = vmatpush.msra.mxu0 %v667
        %697 = vmatpush.msra.mxu0 %v666
        %698 = vmatpush.msra.mxu0 %v665
        %699 = vmatpush.msra.mxu0 %v664
        %700 = vmatpush.msra.mxu0 %v663
        %701 = vmatpush.msra.mxu0 %v662
        %702 = vmatpush.msra.mxu0 %v661
        %703 = vmatpush.msra.mxu0 %v660
        %704 = vmatpush.msra.mxu0 %v659
        %705 = vmatpush.msra.mxu0 %v658
        %706 = vmatpush.msra.mxu0 %v657
        %707 = vmatpush.msra.mxu0 %v656
        %708 = vmatmul.f32.gmra.mxu0 %v386
        %v709 = vpop.f32.mrf.mxu0
        %v710 = vadd.f32 %v690, %v709
        %711 = vdwg.mxu0
        %v712 = vld [vmem:[%s7] sm:$0xff]
        %v713 = vld [vmem:[%s7 + $0x8] sm:$0xff]
        %v714 = vld [vmem:[%s7 + $0x10] sm:$0xff]
        %v715 = vld [vmem:[%s7 + $0x18] sm:$0xff]
        %v716 = vld [vmem:[%s7 + $0x20] sm:$0xff]
        %v717 = vld [vmem:[%s7 + $0x28] sm:$0xff]
        %v718 = vld [vmem:[%s7 + $0x30] sm:$0xff]
        %v719 = vld [vmem:[%s7 + $0x38] sm:$0xff]
        %v720 = vld [vmem:[%s7 + $0x40] sm:$0xf]
        %v721 = vld [vmem:[%s7 + $0x48] sm:$0xf]
        %vm722 = vcmask 293888
        %v724 = vsel %vm722, %v710, 0
        %v727 = vsel %vm468, %v720, 0
        %v730 = vsel %vm468, %v721, 0
        %732 = vmatpush.msra.mxu0 0.0
        %733 = vmatpush.msra.mxu0 0.0
        %734 = vmatpush.msra.mxu0 0.0
        %735 = vmatpush.msra.mxu0 0.0
        %736 = vmatpush.msra.mxu0 0.0
        %737 = vmatpush.msra.mxu0 0.0
        %738 = vmatpush.msra.mxu0 0.0
        %739 = vmatpush.msra.mxu0 0.0
        %740 = vmatpush.msra.mxu0 0.0
        %741 = vmatpush.msra.mxu0 0.0
        %742 = vmatpush.msra.mxu0 0.0
        %743 = vmatpush.msra.mxu0 %v727
        %744 = vmatpush.msra.mxu0 %v718
        %745 = vmatpush.msra.mxu0 %v716
        %746 = vmatpush.msra.mxu0 %v714
        %747 = vmatpush.msra.mxu0 %v712
        %748 = vmatmul.f32.gmra.mxu0 %v724
        %v749 = vpop.f32.mrf.mxu0
        %v750 = vadd.f32 0.0, %v749
        %751 = vdwg.mxu0
        %752 = vmatpush.msra.mxu0 0.0
        %753 = vmatpush.msra.mxu0 0.0
        %754 = vmatpush.msra.mxu0 0.0
        %755 = vmatpush.msra.mxu0 0.0
        %756 = vmatpush.msra.mxu0 0.0
        %757 = vmatpush.msra.mxu0 0.0
        %758 = vmatpush.msra.mxu0 0.0
        %759 = vmatpush.msra.mxu0 0.0
        %760 = vmatpush.msra.mxu0 0.0
        %761 = vmatpush.msra.mxu0 0.0
        %762 = vmatpush.msra.mxu0 0.0
        %763 = vmatpush.msra.mxu0 %v730
        %764 = vmatpush.msra.mxu0 %v719
        %765 = vmatpush.msra.mxu0 %v717
        %766 = vmatpush.msra.mxu0 %v715
        %767 = vmatpush.msra.mxu0 %v713
        %768 = vmatmul.f32.gmra.mxu0 %v724
        %v769 = vpop.f32.mrf.mxu0
        %v770 = vadd.f32 0.0, %v769
        %771 = vdwg.mxu0
        %v772 = vld [vmem:[%s4] sm:$0xff]
        %v773 = vld [vmem:[%s4 + $0x8] sm:$0xff]
        %v774 = vld [vmem:[%s4 + $0x10] sm:$0xff]
        %v775 = vld [vmem:[%s4 + $0x18] sm:$0xff]
        %v776 = vld [vmem:[%s4 + $0x20] sm:$0xff]
        %v777 = vld [vmem:[%s4 + $0x28] sm:$0xff]
        %v778 = vld [vmem:[%s4 + $0x30] sm:$0xff]
        %v779 = vld [vmem:[%s4 + $0x38] sm:$0xff]
        %v780 = vld [vmem:[%s4 + $0x40] sm:$0xff]
        %v781 = vld [vmem:[%s4 + $0x48] sm:$0xff]
        %v782 = vld [vmem:[%s4 + $0x50] sm:$0xff]
        %v783 = vld [vmem:[%s4 + $0x58] sm:$0xff]
        %v784 = vld [vmem:[%s4 + $0x60] sm:$0xff]
        %v785 = vld [vmem:[%s4 + $0x68] sm:$0xff]
        %v786 = vld [vmem:[%s4 + $0x70] sm:$0xff]
        %v787 = vld [vmem:[%s4 + $0x78] sm:$0xff]
        %v788 = vld [vmem:[%s4 + $0x80] sm:$0xff]
        %v789 = vld [vmem:[%s4 + $0x88] sm:$0xff]
        %v790 = vld [vmem:[%s4 + $0x90] sm:$0xff]
        %v791 = vld [vmem:[%s4 + $0x98] sm:$0xff]
        %v792 = vld [vmem:[%s4 + $0xa0] sm:$0xff]
        %v793 = vld [vmem:[%s4 + $0xa8] sm:$0xff]
        %v794 = vld [vmem:[%s4 + $0xb0] sm:$0xff]
        %v795 = vld [vmem:[%s4 + $0xb8] sm:$0xff]
        %v796 = vld [vmem:[%s4 + $0xc0] sm:$0xff]
        %v797 = vld [vmem:[%s4 + $0xc8] sm:$0xff]
        %v798 = vld [vmem:[%s4 + $0xd0] sm:$0xff]
        %v799 = vld [vmem:[%s4 + $0xd8] sm:$0xff]
        %v800 = vld [vmem:[%s4 + $0xe0] sm:$0xff]
        %v801 = vld [vmem:[%s4 + $0xe8] sm:$0xff]
        %v802 = vld [vmem:[%s4 + $0xf0] sm:$0xff]
        %v803 = vld [vmem:[%s4 + $0xf8] sm:$0xff]
        %v804 = vld [vmem:[%s4 + $0x100] sm:$0xff]
        %v805 = vld [vmem:[%s4 + $0x108] sm:$0xff]
        %v806 = vld [vmem:[%s4 + $0x110] sm:$0xff]
        %v807 = vld [vmem:[%s4 + $0x118] sm:$0xff]
        %v808 = vld [vmem:[%s4 + $0x120] sm:$0xff]
        %v809 = vld [vmem:[%s4 + $0x128] sm:$0xff]
        %v810 = vld [vmem:[%s4 + $0x130] sm:$0xff]
        %v811 = vld [vmem:[%s4 + $0x138] sm:$0xff]
        %v812 = vld [vmem:[%s4 + $0x140] sm:$0xff]
        %v813 = vld [vmem:[%s4 + $0x148] sm:$0xff]
        %v814 = vld [vmem:[%s4 + $0x150] sm:$0xff]
        %v815 = vld [vmem:[%s4 + $0x158] sm:$0xff]
        %v816 = vld [vmem:[%s4 + $0x160] sm:$0xff]
        %v817 = vld [vmem:[%s4 + $0x168] sm:$0xff]
        %v818 = vld [vmem:[%s4 + $0x170] sm:$0xff]
        %v819 = vld [vmem:[%s4 + $0x178] sm:$0xff]
        %v820 = vld [vmem:[%s4 + $0x180] sm:$0xff]
        %v821 = vld [vmem:[%s4 + $0x188] sm:$0xff]
        %v822 = vld [vmem:[%s4 + $0x190] sm:$0xff]
        %v823 = vld [vmem:[%s4 + $0x198] sm:$0xff]
        %v824 = vld [vmem:[%s4 + $0x1a0] sm:$0xff]
        %v825 = vld [vmem:[%s4 + $0x1a8] sm:$0xff]
        %v826 = vld [vmem:[%s4 + $0x1b0] sm:$0xff]
        %v827 = vld [vmem:[%s4 + $0x1b8] sm:$0xff]
        %v828 = vld [vmem:[%s4 + $0x1c0] sm:$0xff]
        %v829 = vld [vmem:[%s4 + $0x1c8] sm:$0xff]
        %v830 = vld [vmem:[%s4 + $0x1d0] sm:$0xff]
        %v831 = vld [vmem:[%s4 + $0x1d8] sm:$0xff]
        %v832 = vld [vmem:[%s4 + $0x1e0] sm:$0xff]
        %v833 = vld [vmem:[%s4 + $0x1e8] sm:$0xff]
        %v834 = vld [vmem:[%s4 + $0x1f0] sm:$0xff]
        %v835 = vld [vmem:[%s4 + $0x1f8] sm:$0xff]
        %836 = vmatpush.msra.mxu0 %v802
        %837 = vmatpush.msra.mxu0 %v800
        %838 = vmatpush.msra.mxu0 %v798
        %839 = vmatpush.msra.mxu0 %v796
        %840 = vmatpush.msra.mxu0 %v794
        %841 = vmatpush.msra.mxu0 %v792
        %842 = vmatpush.msra.mxu0 %v790
        %843 = vmatpush.msra.mxu0 %v788
        %844 = vmatpush.msra.mxu0 %v786
        %845 = vmatpush.msra.mxu0 %v784
        %846 = vmatpush.msra.mxu0 %v782
        %847 = vmatpush.msra.mxu0 %v780
        %848 = vmatpush.msra.mxu0 %v778
        %849 = vmatpush.msra.mxu0 %v776
        %850 = vmatpush.msra.mxu0 %v774
        %851 = vmatpush.msra.mxu0 %v772
        %852 = vmatmul.f32.gmra.mxu0 %v385
        %v853 = vpop.f32.mrf.mxu0
        %v854 = vadd.f32 0.0, %v853
        %855 = vdwg.mxu0
        %856 = vmatpush.msra.mxu0 %v834
        %857 = vmatpush.msra.mxu0 %v832
        %858 = vmatpush.msra.mxu0 %v830
        %859 = vmatpush.msra.mxu0 %v828
        %860 = vmatpush.msra.mxu0 %v826
        %861 = vmatpush.msra.mxu0 %v824
        %862 = vmatpush.msra.mxu0 %v822
        %863 = vmatpush.msra.mxu0 %v820
        %864 = vmatpush.msra.mxu0 %v818
        %865 = vmatpush.msra.mxu0 %v816
        %866 = vmatpush.msra.mxu0 %v814
        %867 = vmatpush.msra.mxu0 %v812
        %868 = vmatpush.msra.mxu0 %v810
        %869 = vmatpush.msra.mxu0 %v808
        %870 = vmatpush.msra.mxu0 %v806
        %871 = vmatpush.msra.mxu0 %v804
        %872 = vmatmul.f32.gmra.mxu0 %v386
        %v873 = vpop.f32.mrf.mxu0
        %v874 = vadd.f32 %v854, %v873
        %875 = vdwg.mxu0
        %876 = vmatpush.msra.mxu0 %v803
        %877 = vmatpush.msra.mxu0 %v801
        %878 = vmatpush.msra.mxu0 %v799
        %879 = vmatpush.msra.mxu0 %v797
        %880 = vmatpush.msra.mxu0 %v795
        %881 = vmatpush.msra.mxu0 %v793
        %882 = vmatpush.msra.mxu0 %v791
        %883 = vmatpush.msra.mxu0 %v789
        %884 = vmatpush.msra.mxu0 %v787
        %885 = vmatpush.msra.mxu0 %v785
        %886 = vmatpush.msra.mxu0 %v783
        %887 = vmatpush.msra.mxu0 %v781
        %888 = vmatpush.msra.mxu0 %v779
        %889 = vmatpush.msra.mxu0 %v777
        %890 = vmatpush.msra.mxu0 %v775
        %891 = vmatpush.msra.mxu0 %v773
        %892 = vmatmul.f32.gmra.mxu0 %v385
        %v893 = vpop.f32.mrf.mxu0
        %v894 = vadd.f32 0.0, %v893
        %895 = vdwg.mxu0
        %896 = vmatpush.msra.mxu0 %v835
        %897 = vmatpush.msra.mxu0 %v833
        %898 = vmatpush.msra.mxu0 %v831
        %899 = vmatpush.msra.mxu0 %v829
        %900 = vmatpush.msra.mxu0 %v827
        %901 = vmatpush.msra.mxu0 %v825
        %902 = vmatpush.msra.mxu0 %v823
        %903 = vmatpush.msra.mxu0 %v821
        %904 = vmatpush.msra.mxu0 %v819
        %905 = vmatpush.msra.mxu0 %v817
        %906 = vmatpush.msra.mxu0 %v815
        %907 = vmatpush.msra.mxu0 %v813
        %908 = vmatpush.msra.mxu0 %v811
        %909 = vmatpush.msra.mxu0 %v809
        %910 = vmatpush.msra.mxu0 %v807
        %911 = vmatpush.msra.mxu0 %v805
        %912 = vmatmul.f32.gmra.mxu0 %v386
        %v913 = vpop.f32.mrf.mxu0
        %v914 = vadd.f32 %v894, %v913
        %915 = vdwg.mxu0
        %v916 = vld [vmem:[%s8] sm:$0xff]
        %v917 = vld [vmem:[%s8 + $0x8] sm:$0xff]
        %v918 = vld [vmem:[%s8 + $0x10] sm:$0xff]
        %v919 = vld [vmem:[%s8 + $0x18] sm:$0xff]
        %v920 = vld [vmem:[%s8 + $0x20] sm:$0xff]
        %v921 = vld [vmem:[%s8 + $0x28] sm:$0xff]
        %v922 = vld [vmem:[%s8 + $0x30] sm:$0xff]
        %v923 = vld [vmem:[%s8 + $0x38] sm:$0xff]
        %v924 = vld [vmem:[%s8 + $0x40] sm:$0xff]
        %v925 = vld [vmem:[%s8 + $0x48] sm:$0xff]
        %v926 = vld [vmem:[%s8 + $0x50] sm:$0xff]
        %v927 = vld [vmem:[%s8 + $0x58] sm:$0xff]
        %v928 = vld [vmem:[%s8 + $0x60] sm:$0xff]
        %v929 = vld [vmem:[%s8 + $0x68] sm:$0xff]
        %v930 = vld [vmem:[%s8 + $0x70] sm:$0xff]
        %v931 = vld [vmem:[%s8 + $0x78] sm:$0xff]
        %v932 = vld [vmem:[%s8 + $0x80] sm:$0xff]
        %v933 = vld [vmem:[%s8 + $0x88] sm:$0xff]
        %v934 = vld [vmem:[%s8 + $0x90] sm:$0xff]
        %v935 = vld [vmem:[%s8 + $0x98] sm:$0xff]
        %v936 = vld [vmem:[%s8 + $0xa0] sm:$0xff]
        %v937 = vld [vmem:[%s8 + $0xa8] sm:$0xff]
        %v938 = vld [vmem:[%s8 + $0xb0] sm:$0xff]
        %v939 = vld [vmem:[%s8 + $0xb8] sm:$0xff]
        %v940 = vld [vmem:[%s8 + $0xc0] sm:$0xff]
        %v941 = vld [vmem:[%s8 + $0xc8] sm:$0xff]
        %v942 = vld [vmem:[%s8 + $0xd0] sm:$0xff]
        %v943 = vld [vmem:[%s8 + $0xd8] sm:$0xff]
        %v944 = vld [vmem:[%s8 + $0xe0] sm:$0xff]
        %v945 = vld [vmem:[%s8 + $0xe8] sm:$0xff]
        %v946 = vld [vmem:[%s8 + $0xf0] sm:$0xff]
        %v947 = vld [vmem:[%s8 + $0xf8] sm:$0xff]
        %v948 = vld [vmem:[%s8 + $0x100] sm:$0xff]
        %v949 = vld [vmem:[%s8 + $0x108] sm:$0xff]
        %v950 = vld [vmem:[%s8 + $0x110] sm:$0xff]
        %v951 = vld [vmem:[%s8 + $0x118] sm:$0xff]
        %v952 = vld [vmem:[%s8 + $0x120] sm:$0xff]
        %v953 = vld [vmem:[%s8 + $0x128] sm:$0xff]
        %v954 = vld [vmem:[%s8 + $0x130] sm:$0xff]
        %v955 = vld [vmem:[%s8 + $0x138] sm:$0xff]
        %v956 = vld [vmem:[%s8 + $0x140] sm:$0xff]
        %v957 = vld [vmem:[%s8 + $0x148] sm:$0xff]
        %v958 = vld [vmem:[%s8 + $0x150] sm:$0xff]
        %v959 = vld [vmem:[%s8 + $0x158] sm:$0xff]
        %v960 = vld [vmem:[%s8 + $0x160] sm:$0xff]
        %v961 = vld [vmem:[%s8 + $0x168] sm:$0xff]
        %v962 = vld [vmem:[%s8 + $0x170] sm:$0xff]
        %v963 = vld [vmem:[%s8 + $0x178] sm:$0xff]
        %v964 = vld [vmem:[%s8 + $0x180] sm:$0xf]
        %v965 = vld [vmem:[%s8 + $0x188] sm:$0xf]
        %vm966 = vcmask 556032
        %v968 = vsel %vm966, %v914, 0
        %v971 = vsel %vm468, %v964, 0
        %v974 = vsel %vm468, %v965, 0
        %976 = vmatpush.msra.mxu0 %v946
        %977 = vmatpush.msra.mxu0 %v944
        %978 = vmatpush.msra.mxu0 %v942
        %979 = vmatpush.msra.mxu0 %v940
        %980 = vmatpush.msra.mxu0 %v938
        %981 = vmatpush.msra.mxu0 %v936
        %982 = vmatpush.msra.mxu0 %v934
        %983 = vmatpush.msra.mxu0 %v932
        %984 = vmatpush.msra.mxu0 %v930
        %985 = vmatpush.msra.mxu0 %v928
        %986 = vmatpush.msra.mxu0 %v926
        %987 = vmatpush.msra.mxu0 %v924
        %988 = vmatpush.msra.mxu0 %v922
        %989 = vmatpush.msra.mxu0 %v920
        %990 = vmatpush.msra.mxu0 %v918
        %991 = vmatpush.msra.mxu0 %v916
        %992 = vmatmul.f32.gmra.mxu0 %v874
        %v993 = vpop.f32.mrf.mxu0
        %v994 = vadd.f32 0.0, %v993
        %995 = vdwg.mxu0
        %996 = vmatpush.msra.mxu0 0.0
        %997 = vmatpush.msra.mxu0 0.0
        %998 = vmatpush.msra.mxu0 0.0
        %999 = vmatpush.msra.mxu0 0.0
        %1000 = vmatpush.msra.mxu0 0.0
        %1001 = vmatpush.msra.mxu0 0.0
        %1002 = vmatpush.msra.mxu0 0.0
        %1003 = vmatpush.msra.mxu0 %v971
        %1004 = vmatpush.msra.mxu0 %v962
        %1005 = vmatpush.msra.mxu0 %v960
        %1006 = vmatpush.msra.mxu0 %v958
        %1007 = vmatpush.msra.mxu0 %v956
        %1008 = vmatpush.msra.mxu0 %v954
        %1009 = vmatpush.msra.mxu0 %v952
        %1010 = vmatpush.msra.mxu0 %v950
        %1011 = vmatpush.msra.mxu0 %v948
        %1012 = vmatmul.f32.gmra.mxu0 %v968
        %v1013 = vpop.f32.mrf.mxu0
        %v1014 = vadd.f32 %v994, %v1013
        %1015 = vdwg.mxu0
        %1016 = vmatpush.msra.mxu0 %v947
        %1017 = vmatpush.msra.mxu0 %v945
        %1018 = vmatpush.msra.mxu0 %v943
        %1019 = vmatpush.msra.mxu0 %v941
        %1020 = vmatpush.msra.mxu0 %v939
        %1021 = vmatpush.msra.mxu0 %v937
        %1022 = vmatpush.msra.mxu0 %v935
        %1023 = vmatpush.msra.mxu0 %v933
        %1024 = vmatpush.msra.mxu0 %v931
        %1025 = vmatpush.msra.mxu0 %v929
        %1026 = vmatpush.msra.mxu0 %v927
        %1027 = vmatpush.msra.mxu0 %v925
        %1028 = vmatpush.msra.mxu0 %v923
        %1029 = vmatpush.msra.mxu0 %v921
        %1030 = vmatpush.msra.mxu0 %v919
        %1031 = vmatpush.msra.mxu0 %v917
        %1032 = vmatmul.f32.gmra.mxu0 %v874
        %v1033 = vpop.f32.mrf.mxu0
        %v1034 = vadd.f32 0.0, %v1033
        %1035 = vdwg.mxu0
        %1036 = vmatpush.msra.mxu0 0.0
        %1037 = vmatpush.msra.mxu0 0.0
        %1038 = vmatpush.msra.mxu0 0.0
        %1039 = vmatpush.msra.mxu0 0.0
        %1040 = vmatpush.msra.mxu0 0.0
        %1041 = vmatpush.msra.mxu0 0.0
        %1042 = vmatpush.msra.mxu0 0.0
        %1043 = vmatpush.msra.mxu0 %v974
        %1044 = vmatpush.msra.mxu0 %v963
        %1045 = vmatpush.msra.mxu0 %v961
        %1046 = vmatpush.msra.mxu0 %v959
        %1047 = vmatpush.msra.mxu0 %v957
        %1048 = vmatpush.msra.mxu0 %v955
        %1049 = vmatpush.msra.mxu0 %v953
        %1050 = vmatpush.msra.mxu0 %v951
        %1051 = vmatpush.msra.mxu0 %v949
        %1052 = vmatmul.f32.gmra.mxu0 %v968
        %v1053 = vpop.f32.mrf.mxu0
        %v1054 = vadd.f32 %v1034, %v1053
        %1055 = vdwg.mxu0
        %v1056 = vld [vmem:[%s9] sm:$0xff]
        %v1057 = vld [vmem:[%s9 + $0x8] sm:$0xff]
        %v1058 = vld [vmem:[%s9 + $0x10] sm:$0xff]
        %v1059 = vld [vmem:[%s9 + $0x18] sm:$0xff]
        %v1060 = vld [vmem:[%s9 + $0x20] sm:$0xff]
        %v1061 = vld [vmem:[%s9 + $0x28] sm:$0xff]
        %v1062 = vld [vmem:[%s9 + $0x30] sm:$0xff]
        %v1063 = vld [vmem:[%s9 + $0x38] sm:$0xff]
        %v1064 = vld [vmem:[%s9 + $0x40] sm:$0xff]
        %v1065 = vld [vmem:[%s9 + $0x48] sm:$0xff]
        %v1066 = vld [vmem:[%s9 + $0x50] sm:$0xff]
        %v1067 = vld [vmem:[%s9 + $0x58] sm:$0xff]
        %v1068 = vld [vmem:[%s9 + $0x60] sm:$0xff]
        %v1069 = vld [vmem:[%s9 + $0x68] sm:$0xff]
        %v1070 = vld [vmem:[%s9 + $0x70] sm:$0xff]
        %v1071 = vld [vmem:[%s9 + $0x78] sm:$0xff]
        %v1072 = vld [vmem:[%s10] sm:$0xff]
        %v1073 = vld [vmem:[%s10 + $0x8] sm:$0xff]
        %v1074 = vld [vmem:[%s10 + $0x10] sm:$0xff]
        %v1075 = vld [vmem:[%s10 + $0x18] sm:$0xff]
        %v1076 = vld [vmem:[%s10 + $0x20] sm:$0xff]
        %v1077 = vld [vmem:[%s10 + $0x28] sm:$0xff]
        %v1078 = vld [vmem:[%s10 + $0x30] sm:$0xff]
        %v1079 = vld [vmem:[%s10 + $0x38] sm:$0xff]
        %v1080 = vld [vmem:[%s10 + $0x40] sm:$0xff]
        %v1081 = vld [vmem:[%s10 + $0x48] sm:$0xff]
        %v1082 = vld [vmem:[%s10 + $0x50] sm:$0xff]
        %v1083 = vld [vmem:[%s10 + $0x58] sm:$0xff]
        %v1084 = vld [vmem:[%s10 + $0x60] sm:$0xff]
        %v1085 = vld [vmem:[%s10 + $0x68] sm:$0xff]
        %v1086 = vld [vmem:[%s10 + $0x70] sm:$0xff]
        %v1087 = vld [vmem:[%s10 + $0x78] sm:$0xff]
        %1089 = vset.pattern.permute.xlu0 0
        %1090 = vperm.xlu0 %1089, %v1072
        %v1091 = vpop.permute.xlu0 %1090
        %1094 = vset.pattern.permute.xlu0 0
        %1095 = vperm.xlu0 %1094, %v1073
        %v1096 = vpop.permute.xlu0 %1095
        %1099 = vset.pattern.permute.xlu0 0
        %1100 = vperm.xlu0 %1099, %v1074
        %v1101 = vpop.permute.xlu0 %1100
        %1104 = vset.pattern.permute.xlu0 0
        %1105 = vperm.xlu0 %1104, %v1075
        %v1106 = vpop.permute.xlu0 %1105
        %1109 = vset.pattern.permute.xlu0 0
        %1110 = vperm.xlu0 %1109, %v1076
        %v1111 = vpop.permute.xlu0 %1110
        %1114 = vset.pattern.permute.xlu0 0
        %1115 = vperm.xlu0 %1114, %v1077
        %v1116 = vpop.permute.xlu0 %1115
        %1119 = vset.pattern.permute.xlu0 0
        %1120 = vperm.xlu0 %1119, %v1078
        %v1121 = vpop.permute.xlu0 %1120
        %1124 = vset.pattern.permute.xlu0 0
        %1125 = vperm.xlu0 %1124, %v1079
        %v1126 = vpop.permute.xlu0 %1125
        %1129 = vset.pattern.permute.xlu0 0
        %1130 = vperm.xlu0 %1129, %v1080
        %v1131 = vpop.permute.xlu0 %1130
        %1134 = vset.pattern.permute.xlu0 0
        %1135 = vperm.xlu0 %1134, %v1081
        %v1136 = vpop.permute.xlu0 %1135
        %1139 = vset.pattern.permute.xlu0 0
        %1140 = vperm.xlu0 %1139, %v1082
        %v1141 = vpop.permute.xlu0 %1140
        %1144 = vset.pattern.permute.xlu0 0
        %1145 = vperm.xlu0 %1144, %v1083
        %v1146 = vpop.permute.xlu0 %1145
        %1149 = vset.pattern.permute.xlu0 0
        %1150 = vperm.xlu0 %1149, %v1084
        %v1151 = vpop.permute.xlu0 %1150
        %1154 = vset.pattern.permute.xlu0 0
        %1155 = vperm.xlu0 %1154, %v1085
        %v1156 = vpop.permute.xlu0 %1155
        %1159 = vset.pattern.permute.xlu0 0
        %1160 = vperm.xlu0 %1159, %v1086
        %v1161 = vpop.permute.xlu0 %1160
        %1164 = vset.pattern.permute.xlu0 0
        %1165 = vperm.xlu0 %1164, %v1087
        %v1166 = vpop.permute.xlu0 %1165
        %vm1168 = vcmask 326656
        %v1170 = vsel %vm1168, %v1056, 0
        %v1173 = vsel %vm1168, %v1057, 0
        %v1176 = vsel %vm1168, %v1058, 0
        %v1179 = vsel %vm1168, %v1059, 0
        %v1182 = vsel %vm1168, %v1060, 0
        %v1185 = vsel %vm1168, %v1061, 0
        %v1188 = vsel %vm1168, %v1062, 0
        %v1191 = vsel %vm1168, %v1063, 0
        %v1194 = vsel %vm1168, %v1064, 0
        %v1197 = vsel %vm1168, %v1065, 0
        %v1200 = vsel %vm1168, %v1066, 0
        %v1203 = vsel %vm1168, %v1067, 0
        %v1206 = vsel %vm1168, %v1068, 0
        %v1209 = vsel %vm1168, %v1069, 0
        %v1212 = vsel %vm1168, %v1070, 0
        %v1215 = vsel %vm1168, %v1071, 0
        %1217 = vmatpush.msra.mxu0 0.0
        %1218 = vmatpush.msra.mxu0 0.0
        %1219 = vmatpush.msra.mxu0 0.0
        %1220 = vmatpush.msra.mxu0 0.0
        %1221 = vmatpush.msra.mxu0 0.0
        %1222 = vmatpush.msra.mxu0 0.0
        %1223 = vmatpush.msra.mxu0 0.0
        %1224 = vmatpush.msra.mxu0 0.0
        %1225 = vmatpush.msra.mxu0 0.0
        %1226 = vmatpush.msra.mxu0 0.0
        %1227 = vmatpush.msra.mxu0 0.0
        %1228 = vmatpush.msra.mxu0 %v385
        %1229 = vmatpush.msra.mxu0 %v1014
        %1230 = vmatpush.msra.mxu0 %v750
        %1231 = vmatpush.msra.mxu0 %v618
        %1232 = vmatpush.msra.mxu0 %v491
        %1233 = vmatmul.f32.gmra.mxu0 %v1170
        %v1234 = vpop.f32.mrf.mxu0
        %v1235 = vadd.f32 %v1091, %v1234
        %1236 = vmatmul.f32.gmra.mxu0 %v1173
        %v1237 = vpop.f32.mrf.mxu0
        %v1238 = vadd.f32 %v1096, %v1237
        %1239 = vmatmul.f32.gmra.mxu0 %v1176
        %v1240 = vpop.f32.mrf.mxu0
        %v1241 = vadd.f32 %v1101, %v1240
        %1242 = vmatmul.f32.gmra.mxu0 %v1179
        %v1243 = vpop.f32.mrf.mxu0
        %v1244 = vadd.f32 %v1106, %v1243
        %1245 = vmatmul.f32.gmra.mxu0 %v1182
        %v1246 = vpop.f32.mrf.mxu0
        %v1247 = vadd.f32 %v1111, %v1246
        %1248 = vmatmul.f32.gmra.mxu0 %v1185
        %v1249 = vpop.f32.mrf.mxu0
        %v1250 = vadd.f32 %v1116, %v1249
        %1251 = vmatmul.f32.gmra.mxu0 %v1188
        %v1252 = vpop.f32.mrf.mxu0
        %v1253 = vadd.f32 %v1121, %v1252
        %1254 = vmatmul.f32.gmra.mxu0 %v1191
        %v1255 = vpop.f32.mrf.mxu0
        %v1256 = vadd.f32 %v1126, %v1255
        %1257 = vmatmul.f32.gmra.mxu0 %v1194
        %v1258 = vpop.f32.mrf.mxu0
        %v1259 = vadd.f32 %v1131, %v1258
        %1260 = vmatmul.f32.gmra.mxu0 %v1197
        %v1261 = vpop.f32.mrf.mxu0
        %v1262 = vadd.f32 %v1136, %v1261
        %1263 = vmatmul.f32.gmra.mxu0 %v1200
        %v1264 = vpop.f32.mrf.mxu0
        %v1265 = vadd.f32 %v1141, %v1264
        %1266 = vmatmul.f32.gmra.mxu0 %v1203
        %v1267 = vpop.f32.mrf.mxu0
        %v1268 = vadd.f32 %v1146, %v1267
        %1269 = vmatmul.f32.gmra.mxu0 %v1206
        %v1270 = vpop.f32.mrf.mxu0
        %v1271 = vadd.f32 %v1151, %v1270
        %1272 = vmatmul.f32.gmra.mxu0 %v1209
        %v1273 = vpop.f32.mrf.mxu0
        %v1274 = vadd.f32 %v1156, %v1273
        %1275 = vmatmul.f32.gmra.mxu0 %v1212
        %v1276 = vpop.f32.mrf.mxu0
        %v1277 = vadd.f32 %v1161, %v1276
        %1278 = vmatmul.f32.gmra.mxu0 %v1215
        %v1279 = vpop.f32.mrf.mxu0
        %v1280 = vadd.f32 %v1166, %v1279
        %1281 = vdwg.mxu0
        %1282 = vmatpush.msra.mxu0 0.0
        %1283 = vmatpush.msra.mxu0 0.0
        %1284 = vmatpush.msra.mxu0 0.0
        %1285 = vmatpush.msra.mxu0 0.0
        %1286 = vmatpush.msra.mxu0 0.0
        %1287 = vmatpush.msra.mxu0 0.0
        %1288 = vmatpush.msra.mxu0 0.0
        %1289 = vmatpush.msra.mxu0 0.0
        %1290 = vmatpush.msra.mxu0 0.0
        %1291 = vmatpush.msra.mxu0 0.0
        %1292 = vmatpush.msra.mxu0 0.0
        %1293 = vmatpush.msra.mxu0 %v386
        %1294 = vmatpush.msra.mxu0 %v1054
        %1295 = vmatpush.msra.mxu0 %v770
        %1296 = vmatpush.msra.mxu0 %v638
        %1297 = vmatpush.msra.mxu0 %v511
        %1298 = vmatmul.f32.gmra.mxu0 %v1170
        %v1299 = vpop.f32.mrf.mxu0
        %v1300 = vadd.f32 %v1091, %v1299
        %1301 = vmatmul.f32.gmra.mxu0 %v1173
        %v1302 = vpop.f32.mrf.mxu0
        %v1303 = vadd.f32 %v1096, %v1302
        %1304 = vmatmul.f32.gmra.mxu0 %v1176
        %v1305 = vpop.f32.mrf.mxu0
        %v1306 = vadd.f32 %v1101, %v1305
        %1307 = vmatmul.f32.gmra.mxu0 %v1179
        %v1308 = vpop.f32.mrf.mxu0
        %v1309 = vadd.f32 %v1106, %v1308
        %1310 = vmatmul.f32.gmra.mxu0 %v1182
        %v1311 = vpop.f32.mrf.mxu0
        %v1312 = vadd.f32 %v1111, %v1311
        %1313 = vmatmul.f32.gmra.mxu0 %v1185
        %v1314 = vpop.f32.mrf.mxu0
        %v1315 = vadd.f32 %v1116, %v1314
        %1316 = vmatmul.f32.gmra.mxu0 %v1188
        %v1317 = vpop.f32.mrf.mxu0
        %v1318 = vadd.f32 %v1121, %v1317
        %1319 = vmatmul.f32.gmra.mxu0 %v1191
        %v1320 = vpop.f32.mrf.mxu0
        %v1321 = vadd.f32 %v1126, %v1320
        %1322 = vmatmul.f32.gmra.mxu0 %v1194
        %v1323 = vpop.f32.mrf.mxu0
        %v1324 = vadd.f32 %v1131, %v1323
        %1325 = vmatmul.f32.gmra.mxu0 %v1197
        %v1326 = vpop.f32.mrf.mxu0
        %v1327 = vadd.f32 %v1136, %v1326
        %1328 = vmatmul.f32.gmra.mxu0 %v1200
        %v1329 = vpop.f32.mrf.mxu0
        %v1330 = vadd.f32 %v1141, %v1329
        %1331 = vmatmul.f32.gmra.mxu0 %v1203
        %v1332 = vpop.f32.mrf.mxu0
        %v1333 = vadd.f32 %v1146, %v1332
        %1334 = vmatmul.f32.gmra.mxu0 %v1206
        %v1335 = vpop.f32.mrf.mxu0
        %v1336 = vadd.f32 %v1151, %v1335
        %1337 = vmatmul.f32.gmra.mxu0 %v1209
        %v1338 = vpop.f32.mrf.mxu0
        %v1339 = vadd.f32 %v1156, %v1338
        %1340 = vmatmul.f32.gmra.mxu0 %v1212
        %v1341 = vpop.f32.mrf.mxu0
        %v1342 = vadd.f32 %v1161, %v1341
        %1343 = vmatmul.f32.gmra.mxu0 %v1215
        %v1344 = vpop.f32.mrf.mxu0
        %v1345 = vadd.f32 %v1166, %v1344
        %1346 = vdwg.mxu0
        %v1347 = vmax.f32 %v1235, 0.0
        %v1348 = vmax.f32 %v1300, 0.0
        %v1349 = vmax.f32 %v1238, 0.0
        %v1350 = vmax.f32 %v1303, 0.0
        %v1351 = vmax.f32 %v1241, 0.0
        %v1352 = vmax.f32 %v1306, 0.0
        %v1353 = vmax.f32 %v1244, 0.0
        %v1354 = vmax.f32 %v1309, 0.0
        %v1355 = vmax.f32 %v1247, 0.0
        %v1356 = vmax.f32 %v1312, 0.0
        %v1357 = vmax.f32 %v1250, 0.0
        %v1358 = vmax.f32 %v1315, 0.0
        %v1359 = vmax.f32 %v1253, 0.0
        %v1360 = vmax.f32 %v1318, 0.0
        %v1361 = vmax.f32 %v1256, 0.0
        %v1362 = vmax.f32 %v1321, 0.0
        %v1363 = vmax.f32 %v1259, 0.0
        %v1364 = vmax.f32 %v1324, 0.0
        %v1365 = vmax.f32 %v1262, 0.0
        %v1366 = vmax.f32 %v1327, 0.0
        %v1367 = vmax.f32 %v1265, 0.0
        %v1368 = vmax.f32 %v1330, 0.0
        %v1369 = vmax.f32 %v1268, 0.0
        %v1370 = vmax.f32 %v1333, 0.0
        %v1371 = vmax.f32 %v1271, 0.0
        %v1372 = vmax.f32 %v1336, 0.0
        %v1373 = vmax.f32 %v1274, 0.0
        %v1374 = vmax.f32 %v1339, 0.0
        %v1375 = vmax.f32 %v1277, 0.0
        %v1376 = vmax.f32 %v1342, 0.0
        %v1377 = vmax.f32 %v1280, 0.0
        %v1378 = vmax.f32 %v1345, 0.0
        %1379 = vst [vmem:[%s379] sm:$0xff] %v1347
        %1380 = vst [vmem:[%s379 + $0x8] sm:$0xff] %v1348
        %1381 = vst [vmem:[%s379 + $0x10] sm:$0xff] %v1349
        %1382 = vst [vmem:[%s379 + $0x18] sm:$0xff] %v1350
        %1383 = vst [vmem:[%s379 + $0x20] sm:$0xff] %v1351
        %1384 = vst [vmem:[%s379 + $0x28] sm:$0xff] %v1352
        %1385 = vst [vmem:[%s379 + $0x30] sm:$0xff] %v1353
        %1386 = vst [vmem:[%s379 + $0x38] sm:$0xff] %v1354
        %1387 = vst [vmem:[%s379 + $0x40] sm:$0xff] %v1355
        %1388 = vst [vmem:[%s379 + $0x48] sm:$0xff] %v1356
        %1389 = vst [vmem:[%s379 + $0x50] sm:$0xff] %v1357
        %1390 = vst [vmem:[%s379 + $0x58] sm:$0xff] %v1358
        %1391 = vst [vmem:[%s379 + $0x60] sm:$0xff] %v1359
        %1392 = vst [vmem:[%s379 + $0x68] sm:$0xff] %v1360
        %1393 = vst [vmem:[%s379 + $0x70] sm:$0xff] %v1361
        %1394 = vst [vmem:[%s379 + $0x78] sm:$0xff] %v1362
        %1395 = vst [vmem:[%s379 + $0x80] sm:$0xff] %v1363
        %1396 = vst [vmem:[%s379 + $0x88] sm:$0xff] %v1364
        %1397 = vst [vmem:[%s379 + $0x90] sm:$0xff] %v1365
        %1398 = vst [vmem:[%s379 + $0x98] sm:$0xff] %v1366
        %1399 = vst [vmem:[%s379 + $0xa0] sm:$0xff] %v1367
        %1400 = vst [vmem:[%s379 + $0xa8] sm:$0xff] %v1368
        %1401 = vst [vmem:[%s379 + $0xb0] sm:$0xff] %v1369
        %1402 = vst [vmem:[%s379 + $0xb8] sm:$0xff] %v1370
        %1403 = vst [vmem:[%s379 + $0xc0] sm:$0xff] %v1371
        %1404 = vst [vmem:[%s379 + $0xc8] sm:$0xff] %v1372
        %1405 = vst [vmem:[%s379 + $0xd0] sm:$0xff] %v1373
        %1406 = vst [vmem:[%s379 + $0xd8] sm:$0xff] %v1374
        %1407 = vst [vmem:[%s379 + $0xe0] sm:$0xff] %v1375
        %1408 = vst [vmem:[%s379 + $0xe8] sm:$0xff] %v1376
        %1409 = vst [vmem:[%s379 + $0xf0] sm:$0xff] %v1377
        %1410 = vst [vmem:[%s379 + $0xf8] sm:$0xff] %v1378
        %s1411 = sand.u32 %s269, 1
        %s1412 = scalar_lea.sflag [#allocation3], %s1411
        %s1413 = sand.u32 %s269, 1
        %s1414 = smul.addr %s1413, 256
        %s1415 = scalar_lea.vmem [#allocation2], %s1414
        // Predicated region
        $region65: #{tpu_custom_call.1} parent=63 // pred_check
          %p1416 = pneg %p279
        $region66: #{tpu_custom_call.1} parent=63 // pred_check_branch
          %1418 = sbr.rel (%p1416) target = $region68
        $region67: #{tpu_custom_call.1} parent=63 // pred_region
          %1420 = vsyncadd %s1412, 0
          %s1421 = smul.addr %s25, 32
          %s1422 = smul.addr %s1421, 8
          %s1423 = scalar_lea.hbm %s11, %s1422
          %s1424 = sshll.u32 %s1415, 4
          %s1425 = int_to_ptr.vmem [resolvable:$true] %s1424
          %s1426 = sshll.u32 %s1423, 4
          %s1427 = int_to_ptr.hbm [resolvable:$true] %s1426
          %1432 = dma.vmem_to_hbm [thread:$0]  %s1425, 4096, %s1427, %s1412, 256, 256, 16
        $region68: #{tpu_custom_call.1} parent=63 // pred_fallthru
          _
      $region64: #{tpu_custom_call.1} parent=5 // pred_fallthru
        _
      %p1433 = scmp.le.s32.totalorder 2, %s20
      // Predicated region
      $region69: #{tpu_custom_call.1} parent=5 // pred_check
        %p1434 = pneg %p1433
      $region70: #{tpu_custom_call.1} parent=5 // pred_check_branch
        %1436 = sbr.rel (%p1434) target = $region72
      $region71: #{tpu_custom_call.1} parent=5 // pred_region
        %s1437 = ssub.s32 %s20, 2
        // Predicated region
        $region73: #{tpu_custom_call.1} parent=71 // pred_check
          %p1438 = pneg %p285
        $region74: #{tpu_custom_call.1} parent=71 // pred_check_branch
          %1440 = sbr.rel (%p1438) target = $region76
        $region75: #{tpu_custom_call.1} parent=71 // pred_region
          %s1441 = sand.u32 %s270, 1
          %s1442 = scalar_lea.sflag [#allocation3], %s1441
          %s1443 = sand.u32 %s270, 1
          %s1444 = smul.addr %s1443, 256
          %s1445 = scalar_lea.vmem [#allocation2], %s1444
          %1447 = dma.done %s1442, 4096
        $region76: #{tpu_custom_call.1} parent=71 // pred_fallthru
          _
      $region72: #{tpu_custom_call.1} parent=5 // pred_fallthru
        _
    $region6: #{tpu_custom_call.1} parent=1 // loop_footer
      %s24 = sadd.s32 1, %s20
    $region7: #{tpu_custom_call.1} parent=1 // loop_footer_branch
      %19 = sbr.rel target = $region3
    $region8: #{tpu_custom_call.1} parent=1 // loop_exit
      _
    %1448 = vsyncpa [#allocation3], 1
    %s1449 = scalar_lea.sflag [#allocation3], 1
    %1450 = vsyncpa %s1449, 1

</llo_original>
